<compile_context>
chip_gen: v7x
topology: tpu7x:2x2x1
jax: 0.10.0
libtpu: 0.0.40
codegen_flags: <defaults>
</compile_context>

<pallas_src>
import functools

import jax
import jax.numpy as jnp
from jax import lax
from jax.experimental import pallas as pl
from jax.experimental.pallas import tpu as pltpu


# ---------------------------------------------------------------------------
# Fused masked-mean-pooling + linear head kernel
# ---------------------------------------------------------------------------
def _fused_pool_head_kernel(x_ref, m_ref, w_ref, b_ref,
                            pooled_ref, logits_ref, cnt_ref,
                            *, seq_len, seq_tile, ragged, precision):
    # x_ref:      (TB, ts, H)  hidden-state tile (native dtype)
    # m_ref:      (TB, 1, ts)  attention-mask tile (lane-dense, same dtype as x)
    # w_ref:      (H, O)       head weight (resident, full block)
    # b_ref:      (1, O)       head bias
    # pooled_ref: (TB, 1, H)   f32 output; doubles as the running masked sum
    # logits_ref: (TB, 1, O)   f32 output, written only on the last seq step
    # cnt_ref:    (TB, 1, 1)   f32 running mask count (scratch)
    s = pl.program_id(1)

    @pl.when(s == 0)
    def _init():
        pooled_ref[...] = jnp.zeros_like(pooled_ref)
        cnt_ref[...] = jnp.zeros_like(cnt_ref)

    x = x_ref[...]                      # (TB, ts, H)
    m = m_ref[...]                      # (TB, 1, ts)

    if ragged:
        # Last sequence tile extends past S: select away OOB rows (they may be
        # NaN/Inf in the padded block, so never rely on 0-mask multiplication).
        pos = lax.broadcasted_iota(jnp.int32, (1, seq_tile, 1), 1) + s * seq_tile
        x = jnp.where(pos < seq_len, x, jnp.zeros_like(x))

    # Masked partial sum over this sequence tile as a batched MXU matvec.
    pooled_ref[...] += jnp.einsum(
        'bot,bth->boh', m, x,
        preferred_element_type=jnp.float32, precision=precision)
    # Partial mask count (mask is zero-padded, so padded positions add nothing).
    cnt_ref[...] += jnp.sum(m.astype(jnp.float32), axis=-1, keepdims=True)

    @pl.when(s == pl.num_programs(1) - 1)
    def _finalize():
        denom = jnp.maximum(cnt_ref[...], 1e-9)            # torch.clamp(min=1e-9)
        inv = pl.reciprocal(denom, approx=False)
        mean = pooled_ref[...] * inv                        # (TB, 1, H) f32
        pooled_ref[...] = mean
        head_in = mean.astype(w_ref.dtype)
        logits = jnp.einsum('boh,hk->bok', head_in, w_ref[...],
                            preferred_element_type=jnp.float32,
                            precision=precision)
        logits_ref[...] = (logits + b_ref[...].astype(jnp.float32)
                           ).astype(logits_ref.dtype)


def _choose_batch_block(batch, max_tb=8):
    """Largest divisor of `batch` <= max_tb that keeps >= 2 batch grid steps."""
    best = 1
    for tb in range(1, min(batch, max_tb) + 1):
        if batch % tb == 0 and (batch // tb >= 2 or batch <= 1):
            best = tb
    return best


def pooled_head_forward(last_hidden_state, attention_mask, weight, bias, *,
                        tile_budget_bytes=8 * 1024 * 1024,
                        vmem_limit_bytes=48 * 1024 * 1024):
    """Fused MeanPooling + nn.Linear(H, 3).

    last_hidden_state: (B, S, H) float
    attention_mask:    (B, S) int or float
    weight:            (H, O)
    bias:              (O,)
    returns:           pooled (B, H) f32, logits (B, O) f32
    """
    B, S, H = last_hidden_state.shape
    Hw, O = weight.shape
    assert Hw == H
    x = last_hidden_state
    dtype_bytes = jnp.dtype(x.dtype).itemsize

    tb = _choose_batch_block(B)

    # Largest sequence tile keeping the x block under the budget (safe on v7x's
    # 64 MiB VMEM once double-buffered; v5e/v6e have 128 MiB).
    max_ts = max(8, tile_budget_bytes // max(1, tb * H * dtype_bytes))
    if S <= max_ts:
        ts, num_s, s_pad = S, 1, S          # whole sequence in one tile
    else:
        ts = max(128, (max_ts // 128) * 128)
        num_s = pl.cdiv(S, ts)
        s_pad = num_s * ts
    ragged = (S % ts) != 0

    # Lane-dense mask (B, 1, S_pad). Only the tiny mask is padded; the big
    # (B, S, H) hidden state is NOT copied/padded host-side.
    mask = attention_mask.astype(x.dtype).reshape(B, 1, S)
    if s_pad != S:
        mask = jnp.pad(mask, ((0, 0), (0, 0), (0, s_pad - S)))

    precision = (lax.Precision.HIGHEST if x.dtype == jnp.float32
                 else lax.Precision.DEFAULT)

    kernel = functools.partial(
        _fused_pool_head_kernel,
        seq_len=S, seq_tile=ts, ragged=ragged, precision=precision)

    pooled, logits = pl.pallas_call(
        kernel,
        out_shape=(jax.ShapeDtypeStruct((B, 1, H), jnp.float32),
                   jax.ShapeDtypeStruct((B, 1, O), jnp.float32)),
        grid_spec=pltpu.PrefetchScalarGridSpec(
            num_scalar_prefetch=0,
            grid=(B // tb, num_s),                     # reduction (S) axis last
            in_specs=[
                pl.BlockSpec((tb, ts, H), lambda bi, si: (bi, si, 0)),
                pl.BlockSpec((tb, 1, ts), lambda bi, si: (bi, 0, si)),
                pl.BlockSpec((H, O), lambda bi, si: (0, 0)),
                pl.BlockSpec((1, O), lambda bi, si: (0, 0)),
            ],
            out_specs=[
                pl.BlockSpec((tb, 1, H), lambda bi, si: (bi, 0, 0)),
                pl.BlockSpec((tb, 1, O), lambda bi, si: (bi, 0, 0)),
            ],
            scratch_shapes=[
                pltpu.VMEM((tb, 1, 1), jnp.float32),   # mask-count accumulator
            ],
        ),
        compiler_params=pltpu.CompilerParams(
            dimension_semantics=("parallel", "arbitrary"),
            vmem_limit_bytes=vmem_limit_bytes,
        ),
    )(x, mask, weight, bias.reshape(1, O))
    return pooled.reshape(B, H), logits.reshape(B, O)


def cross_entropy_loss(logits, labels):
    # F.cross_entropy over (B, 3): far too small for a custom kernel; left to XLA.
    logp = jax.nn.log_softmax(logits, axis=-1)
    return -jnp.mean(jnp.take_along_axis(logp, labels[:, None], axis=-1))


# ---------------------------------------------------------------------------
if __name__ == "__main__":
    key = jax.random.PRNGKey(0)
    ks = jax.random.split(key, 10)

    # --- Test 1: small f32 shapes, single sequence tile, fused pooling + head ---
    B, S, H, O = 2, 8, 32, 3
    hidden = jax.random.normal(ks[0], (B, S, H), dtype=jnp.float32)
    attn = (jax.random.uniform(ks[1], (B, S)) > 0.3).astype(jnp.int32)
    w = jax.random.normal(ks[2], (H, O), dtype=jnp.float32) * 0.02
    bias = jax.random.normal(ks[3], (O,), dtype=jnp.float32) * 0.02

    pooled, logits = pooled_head_forward(hidden, attn, w, bias)
    jax.block_until_ready(logits)

    m = attn[:, :, None].astype(jnp.float32)
    pooled_ref = jnp.sum(hidden * m, 1) / jnp.clip(jnp.sum(m, 1), 1e-9, None)
    logits_ref = jnp.dot(pooled_ref, w, precision=lax.Precision.HIGHEST) + bias
    assert pooled.shape == (B, H) and logits.shape == (B, O)
    assert jnp.allclose(pooled, pooled_ref, atol=1e-5, rtol=1e-5)
    assert jnp.allclose(logits, logits_ref, atol=1e-5, rtol=1e-5)

    labels = jnp.array([0, 2], dtype=jnp.int32)
    loss = cross_entropy_loss(logits, labels)
    jax.block_until_ready(loss)

    # --- Test 2: S-tiled path with ragged tail (S=200, ts=128); x NOT padded ---
    B2, S2, H2 = 2, 200, 128
    hidden2 = jax.random.normal(ks[4], (B2, S2, H2), dtype=jnp.float32)
    attn2 = (jax.random.uniform(ks[5], (B2, S2)) > 0.3).astype(jnp.int32)
    w2 = jax.random.normal(ks[6], (H2, O), dtype=jnp.float32) * 0.02
    b2 = jnp.zeros((O,), dtype=jnp.float32)
    pooled2, logits2 = pooled_head_forward(
        hidden2, attn2, w2, b2, tile_budget_bytes=128 * H2 * 4)
    jax.block_until_ready(logits2)

    m2 = attn2[:, :, None].astype(jnp.float32)
    pooled2_ref = jnp.sum(hidden2 * m2, 1) / jnp.clip(jnp.sum(m2, 1), 1e-9, None)
    logits2_ref = jnp.dot(pooled2_ref, w2, precision=lax.Precision.HIGHEST) + b2
    assert jnp.allclose(pooled2, pooled2_ref, atol=1e-4, rtol=1e-4)
    assert jnp.allclose(logits2, logits2_ref, atol=1e-4, rtol=1e-4)

    # --- Test 3: bf16 inputs, batch-blocked (TB=4), DEFAULT-precision path ---
    B3, S3, H3 = 8, 128, 256
    hidden3 = jax.random.normal(ks[7], (B3, S3, H3),
                                dtype=jnp.float32).astype(jnp.bfloat16)
    attn3 = (jax.random.uniform(ks[8], (B3, S3)) > 0.3).astype(jnp.int32)
    w3 = (jax.random.normal(ks[9], (H3, O), dtype=jnp.float32) * 0.02
          ).astype(jnp.bfloat16)
    b3 = jnp.zeros((O,), dtype=jnp.bfloat16)
    pooled3, logits3 = pooled_head_forward(hidden3, attn3, w3, b3)
    jax.block_until_ready(logits3)

    m3 = attn3[:, :, None].astype(jnp.float32)
    h3f = hidden3.astype(jnp.float32)
    pooled3_ref = jnp.sum(h3f * m3, 1) / jnp.clip(jnp.sum(m3, 1), 1e-9, None)
    logits3_ref = (jnp.dot(pooled3_ref.astype(jnp.bfloat16).astype(jnp.float32),
                           w3.astype(jnp.float32))
                   + b3.astype(jnp.float32))
    assert jnp.allclose(pooled3, pooled3_ref, atol=1e-3, rtol=1e-3)
    assert jnp.allclose(logits3, logits3_ref, atol=2e-2, rtol=2e-2)

    print("KERNEL_OK")
</pallas_src>

<mosaic_0001>
module attributes {stable_mosaic.version = 11 : i64} {
  func.func @_fused_pool_head_kernel(%arg0: i32, %arg1: i32, %arg2: memref<1x8x32xf32, #tpu.memory_space<vmem>>, %arg3: memref<1x1x8xf32, #tpu.memory_space<vmem>>, %arg4: memref<32x3xf32, #tpu.memory_space<vmem>>, %arg5: memref<1x3xf32, #tpu.memory_space<vmem>>, %arg6: memref<1x1x32xf32, #tpu.memory_space<vmem>>, %arg7: memref<1x1x3xf32, #tpu.memory_space<vmem>>, %arg8: memref<1x1x1xf32, #tpu.memory_space<vmem>>) attributes {dimension_semantics = [#tpu.dimension_semantics<parallel>, #tpu.dimension_semantics<arbitrary>], iteration_bounds = array<i64: 2, 1>, scalar_prefetch = 0 : i64, scratch_operands = 1 : i64, tpu.core_type = #tpu.core_type<tc>, window_params = [{transform_indices = @transform_0, window_bounds = array<i64: 1, 8, 32>}, {transform_indices = @transform_1, window_bounds = array<i64: 1, 1, 8>}, {pipeline_mode = #tpu.pipeline_mode<synchronous>, transform_indices = @transform_2, window_bounds = array<i64: 32, 3>}, {pipeline_mode = #tpu.pipeline_mode<synchronous>, transform_indices = @transform_3, window_bounds = array<i64: 1, 3>}, {transform_indices = @transform_4, window_bounds = array<i64: 1, 1, 32>}, {transform_indices = @transform_5, window_bounds = array<i64: 1, 1, 3>}]} {
    %c0_i32 = arith.constant 0 : i32
    %0 = arith.cmpi eq, %arg1, %c0_i32 : i32
    %1 = arith.extui %0 : i1 to i32
    %c0_i32_0 = arith.constant 0 : i32
    %2 = arith.cmpi ne, %1, %c0_i32_0 : i32
    scf.if %2 {
      %cst_21 = arith.constant 0.000000e+00 : f32
      %17 = vector.broadcast %cst_21 : f32 to vector<1x1x32xf32>
      %c0_22 = arith.constant 0 : index
      %c0_23 = arith.constant 0 : index
      %c0_24 = arith.constant 0 : index
      %18 = vector.load %arg6[%c0_22, %c0_23, %c0_24] : memref<1x1x32xf32, #tpu.memory_space<vmem>>, vector<1x1x32xf32>
      tpu.vector_store %arg6[%c0_22, %c0_23, %c0_24], %17 {strides = array<i32>} : memref<1x1x32xf32, #tpu.memory_space<vmem>>, vector<1x1x32xf32>,
      %cst_25 = arith.constant 0.000000e+00 : f32
      %19 = vector.broadcast %cst_25 : f32 to vector<1x1x1xf32>
      %c0_26 = arith.constant 0 : index
      %c0_27 = arith.constant 0 : index
      %c0_28 = arith.constant 0 : index
      %20 = vector.load %arg8[%c0_26, %c0_27, %c0_28] : memref<1x1x1xf32, #tpu.memory_space<vmem>>, vector<1x1x1xf32>
      tpu.vector_store %arg8[%c0_26, %c0_27, %c0_28], %19 {strides = array<i32>} : memref<1x1x1xf32, #tpu.memory_space<vmem>>, vector<1x1x1xf32>,
    } else {
    }
    %c0 = arith.constant 0 : index
    %c0_1 = arith.constant 0 : index
    %c0_2 = arith.constant 0 : index
    %3 = vector.load %arg2[%c0, %c0_1, %c0_2] : memref<1x8x32xf32, #tpu.memory_space<vmem>>, vector<1x8x32xf32>
    %c0_3 = arith.constant 0 : index
    %c0_4 = arith.constant 0 : index
    %c0_5 = arith.constant 0 : index
    %4 = vector.load %arg3[%c0_3, %c0_4, %c0_5] : memref<1x1x8xf32, #tpu.memory_space<vmem>>, vector<1x1x8xf32>
    %c0_6 = arith.constant 0 : index
    %c0_7 = arith.constant 0 : index
    %c0_8 = arith.constant 0 : index
    %5 = vector.load %arg6[%c0_6, %c0_7, %c0_8] : memref<1x1x32xf32, #tpu.memory_space<vmem>>, vector<1x1x32xf32>
    "tpu.trace_start"() <{level = 10 : i32, message = "bot,bth->boh"}> : () -> ()
    %cst = arith.constant dense<0.000000e+00> : vector<1x1x32xf32>
    %6 = tpu.matmul %4, %3, %cst {dimension_numbers = #tpu.dot_dimension_numbers<[2], [1], [1], [2], [0, 0, 0, 1, 1, 2], [0], [0]>, precision = #tpu.contract_precision<fp32>} : vector<1x1x8xf32>, vector<1x8x32xf32>, vector<1x1x32xf32> -> vector<1x1x32xf32>
    "tpu.trace_stop"() : () -> ()
    %7 = arith.addf %5, %6 : vector<1x1x32xf32>
    %c0_9 = arith.constant 0 : index
    %c0_10 = arith.constant 0 : index
    %c0_11 = arith.constant 0 : index
    %8 = vector.load %arg6[%c0_9, %c0_10, %c0_11] : memref<1x1x32xf32, #tpu.memory_space<vmem>>, vector<1x1x32xf32>
    tpu.vector_store %arg6[%c0_9, %c0_10, %c0_11], %7 {strides = array<i32>} : memref<1x1x32xf32, #tpu.memory_space<vmem>>, vector<1x1x32xf32>,
    %c0_12 = arith.constant 0 : index
    %c0_13 = arith.constant 0 : index
    %c0_14 = arith.constant 0 : index
    %9 = vector.load %arg8[%c0_12, %c0_13, %c0_14] : memref<1x1x1xf32, #tpu.memory_space<vmem>>, vector<1x1x1xf32>
    %cst_15 = arith.constant dense<0.000000e+00> : vector<1x1xf32>
    %10 = vector.multi_reduction <add>, %4, %cst_15 [2] : vector<1x1x8xf32> to vector<1x1xf32>
    %11 = vector.shape_cast %10 : vector<1x1xf32> to vector<1x1x1xf32>
    %12 = arith.addf %9, %11 : vector<1x1x1xf32>
    %c0_16 = arith.constant 0 : index
    %c0_17 = arith.constant 0 : index
    %c0_18 = arith.constant 0 : index
    %13 = vector.load %arg8[%c0_16, %c0_17, %c0_18] : memref<1x1x1xf32, #tpu.memory_space<vmem>>, vector<1x1x1xf32>
    tpu.vector_store %arg8[%c0_16, %c0_17, %c0_18], %12 {strides = array<i32>} : memref<1x1x1xf32, #tpu.memory_space<vmem>>, vector<1x1x1xf32>,
    %c0_i32_19 = arith.constant 0 : i32
    %14 = arith.cmpi eq, %arg1, %c0_i32_19 : i32
    %15 = arith.extui %14 : i1 to i32
    %c0_i32_20 = arith.constant 0 : i32
    %16 = arith.cmpi ne, %15, %c0_i32_20 : i32
    scf.if %16 {
      %c0_21 = arith.constant 0 : index
      %c0_22 = arith.constant 0 : index
      %c0_23 = arith.constant 0 : index
      %17 = vector.load %arg8[%c0_21, %c0_22, %c0_23] : memref<1x1x1xf32, #tpu.memory_space<vmem>>, vector<1x1x1xf32>
      %cst_24 = arith.constant 9.99999971E-10 : f32
      %18 = vector.broadcast %cst_24 : f32 to vector<1x1x1xf32>
      %19 = arith.maximumf %17, %18 : vector<1x1x1xf32>
      %20 = tpu.reciprocal %19 : vector<1x1x1xf32> -> vector<1x1x1xf32>
      %c0_25 = arith.constant 0 : index
      %c0_26 = arith.constant 0 : index
      %c0_27 = arith.constant 0 : index
      %21 = vector.load %arg6[%c0_25, %c0_26, %c0_27] : memref<1x1x32xf32, #tpu.memory_space<vmem>>, vector<1x1x32xf32>
      %22 = vector.broadcast %20 : vector<1x1x1xf32> to vector<1x1x32xf32>
      %23 = arith.mulf %21, %22 : vector<1x1x32xf32>
      %c0_28 = arith.constant 0 : index
      %c0_29 = arith.constant 0 : index
      %c0_30 = arith.constant 0 : index
      %24 = vector.load %arg6[%c0_28, %c0_29, %c0_30] : memref<1x1x32xf32, #tpu.memory_space<vmem>>, vector<1x1x32xf32>
      tpu.vector_store %arg6[%c0_28, %c0_29, %c0_30], %23 {strides = array<i32>} : memref<1x1x32xf32, #tpu.memory_space<vmem>>, vector<1x1x32xf32>,
      %c0_31 = arith.constant 0 : index
      %c0_32 = arith.constant 0 : index
      %25 = vector.load %arg4[%c0_31, %c0_32] : memref<32x3xf32, #tpu.memory_space<vmem>>, vector<32x3xf32>
      "tpu.trace_start"() <{level = 10 : i32, message = "boh,hk->bok"}> : () -> ()
      %cst_33 = arith.constant dense<0.000000e+00> : vector<1x1x3xf32>
      %26 = tpu.matmul %23, %25, %cst_33 {dimension_numbers = #tpu.dot_dimension_numbers<[2], [0], [0, 1], [1], [0, 0, 0, 1, 1, 1], [], []>, precision = #tpu.contract_precision<fp32>} : vector<1x1x32xf32>, vector<32x3xf32>, vector<1x1x3xf32> -> vector<1x1x3xf32>
      "tpu.trace_stop"() : () -> ()
      %c0_34 = arith.constant 0 : index
      %c0_35 = arith.constant 0 : index
      %27 = vector.load %arg5[%c0_34, %c0_35] : memref<1x3xf32, #tpu.memory_space<vmem>>, vector<1x3xf32>
      %28 = vector.shape_cast %27 : vector<1x3xf32> to vector<1x1x3xf32>
      %29 = arith.addf %26, %28 : vector<1x1x3xf32>
      %c0_36 = arith.constant 0 : index
      %c0_37 = arith.constant 0 : index
      %c0_38 = arith.constant 0 : index
      %30 = vector.load %arg7[%c0_36, %c0_37, %c0_38] : memref<1x1x3xf32, #tpu.memory_space<vmem>>, vector<1x1x3xf32>
      tpu.vector_store %arg7[%c0_36, %c0_37, %c0_38], %29 {strides = array<i32>} : memref<1x1x3xf32, #tpu.memory_space<vmem>>, vector<1x1x3xf32>,
    } else {
    }
    return
  }
  func.func @transform_0(%arg0: i32, %arg1: i32) -> (i32, i32, i32) {
    %c0_i32 = arith.constant 0 : i32
    %c0_i32_0 = arith.constant 0 : i32
    return %arg0, %arg1, %c0_i32 : i32, i32, i32
  }
  func.func @transform_1(%arg0: i32, %arg1: i32) -> (i32, i32, i32) {
    %c0_i32 = arith.constant 0 : i32
    %c0_i32_0 = arith.constant 0 : i32
    return %arg0, %c0_i32, %arg1 : i32, i32, i32
  }
  func.func @transform_2(%arg0: i32, %arg1: i32) -> (i32, i32) {
    %c0_i32 = arith.constant 0 : i32
    %c0_i32_0 = arith.constant 0 : i32
    %c0_i32_1 = arith.constant 0 : i32
    return %c0_i32, %c0_i32_0 : i32, i32
  }
  func.func @transform_3(%arg0: i32, %arg1: i32) -> (i32, i32) {
    %c0_i32 = arith.constant 0 : i32
    %c0_i32_0 = arith.constant 0 : i32
    %c0_i32_1 = arith.constant 0 : i32
    return %c0_i32, %c0_i32_0 : i32, i32
  }
  func.func @transform_4(%arg0: i32, %arg1: i32) -> (i32, i32, i32) {
    %c0_i32 = arith.constant 0 : i32
    %c0_i32_0 = arith.constant 0 : i32
    %c0_i32_1 = arith.constant 0 : i32
    return %arg0, %c0_i32, %c0_i32_0 : i32, i32, i32
  }
  func.func @transform_5(%arg0: i32, %arg1: i32) -> (i32, i32, i32) {
    %c0_i32 = arith.constant 0 : i32
    %c0_i32_0 = arith.constant 0 : i32
    %c0_i32_1 = arith.constant 0 : i32
    return %arg0, %c0_i32, %c0_i32_0 : i32, i32, i32
  }
}

</mosaic_0001>

<llo_original>
// kernel: tpu_custom_call.1
$region0: #{tpu_custom_call.1}
  #allocation0 [shape = 'u32[]', space=smem, size = 0x4, offset = 0x4, fixed_abs, tag = 'smem constant byte address 0x4 - core index']
  #allocation1 [shape = 'u32[144,128]{1,0:T(1,128)}', space=vmem, size = 0x12000, scoped, tag = 'internal scratch']
  #allocation2 [shape = 'f32[1,1,1]{2,1,0:T(1,128)}', space=vmem, size = 0x200, scoped, tag = 'scratch operand']
  %s0 = inlined_call_operand.vmem [shape: f32[2,8,32], index: 0, kind: input, shape index: {}]
  %s1 = inlined_call_operand.vmem [shape: f32[2,1,8], index: 1, kind: input, shape index: {}]
  %s2 = inlined_call_operand.vmem [shape: f32[32,3], index: 2, kind: input, shape index: {}]
  %s3 = inlined_call_operand.vmem [shape: f32[1,3], index: 3, kind: input, shape index: {}]
  %s4 = inlined_call_operand.hbm [shape: f32[2,1,32], index: 4, kind: output, shape index: {0}]
  %s5 = inlined_call_operand.hbm [shape: f32[2,1,3], index: 5, kind: output, shape index: {1}]
  %6 = xla_tuple %s4, %s5
  %s7 = sld [smem:[#allocation0]]
  $region65: #{tpu_custom_call.1} parent=0
    _
  %s9 = ssub.s32 1, %s7
  %s10 = scalar_select 0, %s9, %s7
  $region1: #{tpu_custom_call.1} parent=0
    #allocation3 [shape = 'u8[1024]{0}', space=vmem, size = 0x400, scoped, tag = 'output window, operand 0']
    #allocation4 [shape = 's32[2]{0}', space=sflag, size = 0x8, scoped, tag = 'scoped memory for tpu_custom_call.1']
    #allocation5 [shape = 'u8[1024]{0}', space=vmem, size = 0x400, scoped, tag = 'output window, operand 1']
    #allocation6 [shape = 's32[2]{0}', space=sflag, size = 0x8, scoped, tag = 'scoped memory for tpu_custom_call.1']
    %11 = vsyncpa [#allocation4], 0
    %s12 = scalar_lea.sflag [#allocation4], 1
    %13 = vsyncpa %s12, 0
    %14 = vsyncpa [#allocation6], 0
    %s15 = scalar_lea.sflag [#allocation6], 1
    %16 = vsyncpa %s15, 0
    loop: start=0, step=1, limit=4
    $region2: #{tpu_custom_call.1} parent=1 // loop_pre_header
      _
    $region3: #{tpu_custom_call.1} parent=1 // loop_header
      %s18 = sphi 0, %s22
      %p19 = scmp.ge.s32.totalorder %s18, 4
      %s25 = sphi 0, %s37
      %s26 = sphi 0, %s33
      %s27 = sphi 0, %s25
      %s28 = sphi 0, %s26
      %s29 = sphi 0, %s27
      %s30 = sphi 0, %s28
      %s42 = sphi 0, %s44
      %s45 = sphi 0, %s42
      %s46 = sphi 0, %s45
      %s62 = sphi 0, %s46
      %s70 = sphi 0, %s72
      %s73 = sphi 0, %s70
      %s74 = sphi 0, %s73
      %s90 = sphi 0, %s74
      %s94 = sphi 0, %s94
      %s96 = sphi 0, %s94
      %s97 = sphi 0, %s96
      %s111 = sphi 0, %s97
      %s115 = sphi 0, %s115
      %s117 = sphi 0, %s115
      %s118 = sphi 0, %s117
      %s132 = sphi 0, %s118
      %s138 = sphi 0, %s140
      %s141 = sphi 0, %s138
      %s142 = sphi 0, %s141
      %s158 = sphi 0, %s142
      %s164 = sphi 0, %s166
      %s167 = sphi 0, %s164
      %s168 = sphi 0, %s167
      %s184 = sphi 0, %s168
    $region4: #{tpu_custom_call.1} parent=1 // loop_header_branch
      %21 = sbr.rel (%p19) target = $region8
    $region5: #{tpu_custom_call.1} parent=1 // loop_body
      %s23 = ssub.s32 %s18, 1
      %s24 = ssub.s32 %s18, 2
      %s31 = sadd.s32 1, %s26
      %p32 = scmp.ge.s32.totalorder %s31, 1
      %s33 = scalar_select %p32, 0, %s31
      %s34 = sadd.s32 1, %s25
      %s35 = scalar_select %p32, %s34, %s25
      %p36 = scmp.ge.s32.totalorder %s35, 2
      %s37 = scalar_select %p36, 0, %s35
      %s38 = ssub.s32 %s25, %s37
      %s39 = ssub.s32 %s26, %s33
      %s40 = sor.u32 %s38, %s39
      %p41 = scmp.eq.s32.totalorder %s40, 0
      %s43 = sadd.s32 %s42, 1
      %s44 = scalar_select %p41, %s42, %s43
      %p47 = pneg %p41
      %p48 = scmp.eq.s32.totalorder %s18, 1
      %p49 = por %p47, %p48
      %p50 = scmp.ne.s32.totalorder %s42, %s45
      %p51 = scmp.eq.s32.totalorder %s18, 0
      %p52 = por %p50, %p51
      %p53 = scmp.ne.s32.totalorder %s42, %s45
      %p54 = scmp.eq.s32.totalorder %s23, 1
      %p55 = por %p53, %p54
      %p56 = scmp.ne.s32.totalorder %s45, %s46
      %p57 = scmp.eq.s32.totalorder %s23, 0
      %p58 = por %p56, %p57
      %p59 = scmp.ne.s32.totalorder %s45, %s46
      %p60 = scmp.eq.s32.totalorder %s24, 1
      %p61 = por %p59, %p60
      %p63 = scmp.ne.s32.totalorder %s46, %s62
      %p64 = scmp.eq.s32.totalorder %s24, 0
      %p65 = por %p63, %p64
      %s66 = ssub.s32 %s25, %s37
      %s67 = ssub.s32 %s26, %s33
      %s68 = sor.u32 %s66, %s67
      %p69 = scmp.eq.s32.totalorder %s68, 0
      %s71 = sadd.s32 %s70, 1
      %s72 = scalar_select %p69, %s70, %s71
      %p75 = pneg %p69
      %p76 = scmp.eq.s32.totalorder %s18, 1
      %p77 = por %p75, %p76
      %p78 = scmp.ne.s32.totalorder %s70, %s73
      %p79 = scmp.eq.s32.totalorder %s18, 0
      %p80 = por %p78, %p79
      %p81 = scmp.ne.s32.totalorder %s70, %s73
      %p82 = scmp.eq.s32.totalorder %s23, 1
      %p83 = por %p81, %p82
      %p84 = scmp.ne.s32.totalorder %s73, %s74
      %p85 = scmp.eq.s32.totalorder %s23, 0
      %p86 = por %p84, %p85
      %p87 = scmp.ne.s32.totalorder %s73, %s74
      %p88 = scmp.eq.s32.totalorder %s24, 1
      %p89 = por %p87, %p88
      %p91 = scmp.ne.s32.totalorder %s74, %s90
      %p92 = scmp.eq.s32.totalorder %s24, 0
      %p93 = por %p91, %p92
      %s95 = sadd.s32 %s94, 1
      %p98 = scmp.eq.s32.totalorder %s18, 1
      %p99 = scmp.ne.s32.totalorder %s94, %s96
      %p100 = scmp.eq.s32.totalorder %s18, 0
      %p101 = por %p99, %p100
      %p102 = scmp.ne.s32.totalorder %s94, %s96
      %p103 = scmp.eq.s32.totalorder %s23, 1
      %p104 = por %p102, %p103
      %p105 = scmp.ne.s32.totalorder %s96, %s97
      %p106 = scmp.eq.s32.totalorder %s23, 0
      %p107 = por %p105, %p106
      %p108 = scmp.ne.s32.totalorder %s96, %s97
      %p109 = scmp.eq.s32.totalorder %s24, 1
      %p110 = por %p108, %p109
      %p112 = scmp.ne.s32.totalorder %s97, %s111
      %p113 = scmp.eq.s32.totalorder %s24, 0
      %p114 = por %p112, %p113
      %s116 = sadd.s32 %s115, 1
      %p119 = scmp.eq.s32.totalorder %s18, 1
      %p120 = scmp.ne.s32.totalorder %s115, %s117
      %p121 = scmp.eq.s32.totalorder %s18, 0
      %p122 = por %p120, %p121
      %p123 = scmp.ne.s32.totalorder %s115, %s117
      %p124 = scmp.eq.s32.totalorder %s23, 1
      %p125 = por %p123, %p124
      %p126 = scmp.ne.s32.totalorder %s117, %s118
      %p127 = scmp.eq.s32.totalorder %s23, 0
      %p128 = por %p126, %p127
      %p129 = scmp.ne.s32.totalorder %s117, %s118
      %p130 = scmp.eq.s32.totalorder %s24, 1
      %p131 = por %p129, %p130
      %p133 = scmp.ne.s32.totalorder %s118, %s132
      %p134 = scmp.eq.s32.totalorder %s24, 0
      %p135 = por %p133, %p134
      %s136 = ssub.s32 %s25, %s37
      %p137 = scmp.eq.s32.totalorder %s136, 0
      %s139 = sadd.s32 %s138, 1
      %s140 = scalar_select %p137, %s138, %s139
      %p143 = pneg %p137
      %p144 = scmp.eq.s32.totalorder %s18, 1
      %p145 = por %p143, %p144
      %p146 = scmp.ne.s32.totalorder %s138, %s141
      %p147 = scmp.eq.s32.totalorder %s18, 0
      %p148 = por %p146, %p147
      %p149 = scmp.ne.s32.totalorder %s138, %s141
      %p150 = scmp.eq.s32.totalorder %s23, 1
      %p151 = por %p149, %p150
      %p152 = scmp.ne.s32.totalorder %s141, %s142
      %p153 = scmp.eq.s32.totalorder %s23, 0
      %p154 = por %p152, %p153
      %p155 = scmp.ne.s32.totalorder %s141, %s142
      %p156 = scmp.eq.s32.totalorder %s24, 1
      %p157 = por %p155, %p156
      %p159 = scmp.ne.s32.totalorder %s142, %s158
      %p160 = scmp.eq.s32.totalorder %s24, 0
      %p161 = por %p159, %p160
      %s162 = ssub.s32 %s25, %s37
      %p163 = scmp.eq.s32.totalorder %s162, 0
      %s165 = sadd.s32 %s164, 1
      %s166 = scalar_select %p163, %s164, %s165
      %p169 = pneg %p163
      %p170 = scmp.eq.s32.totalorder %s18, 1
      %p171 = por %p169, %p170
      %p172 = scmp.ne.s32.totalorder %s164, %s167
      %p173 = scmp.eq.s32.totalorder %s18, 0
      %p174 = por %p172, %p173
      %p175 = scmp.ne.s32.totalorder %s164, %s167
      %p176 = scmp.eq.s32.totalorder %s23, 1
      %p177 = por %p175, %p176
      %p178 = scmp.ne.s32.totalorder %s167, %s168
      %p179 = scmp.eq.s32.totalorder %s23, 0
      %p180 = por %p178, %p179
      %p181 = scmp.ne.s32.totalorder %s167, %s168
      %p182 = scmp.eq.s32.totalorder %s24, 1
      %p183 = por %p181, %p182
      %p185 = scmp.ne.s32.totalorder %s168, %s184
      %p186 = scmp.eq.s32.totalorder %s24, 0
      %p187 = por %p185, %p186
      %p188 = scmp.le.s32.totalorder 1, %s18
      %p189 = scmp.lt.s32.totalorder %s18, 3
      %p190 = pnand %p188, %p189
      %p191 = pneg %p190
      // Predicated region
      $region9: #{tpu_custom_call.1} parent=5 // pred_check
        _
      $region10: #{tpu_custom_call.1} parent=5 // pred_check_branch
        %193 = sbr.rel (%p190) target = $region12
      $region11: #{tpu_custom_call.1} parent=5 // pred_region
        %s194 = ssub.s32 %s18, 1
        // Predicated region
        $region13: #{tpu_custom_call.1} parent=11 // pred_check
          %p195 = pneg %p107
        $region14: #{tpu_custom_call.1} parent=11 // pred_check_branch
          %197 = sbr.rel (%p195) target = $region16
        $region15: #{tpu_custom_call.1} parent=11 // pred_region
          _
        $region16: #{tpu_custom_call.1} parent=11 // pred_fallthru
          _
        // Predicated region
        $region17: #{tpu_custom_call.1} parent=11 // pred_check
          %p198 = pneg %p128
        $region18: #{tpu_custom_call.1} parent=11 // pred_check_branch
          %200 = sbr.rel (%p198) target = $region20
        $region19: #{tpu_custom_call.1} parent=11 // pred_region
          _
        $region20: #{tpu_custom_call.1} parent=11 // pred_fallthru
          _
      $region12: #{tpu_custom_call.1} parent=5 // pred_fallthru
        _
      %p201 = scmp.lt.s32.totalorder %s18, 2
      // Predicated region
      $region21: #{tpu_custom_call.1} parent=5 // pred_check
        %p202 = pneg %p201
      $region22: #{tpu_custom_call.1} parent=5 // pred_check_branch
        %204 = sbr.rel (%p202) target = $region24
      $region23: #{tpu_custom_call.1} parent=5 // pred_region
        // Predicated region
        $region25: #{tpu_custom_call.1} parent=23 // pred_check
          %p205 = pneg %p52
        $region26: #{tpu_custom_call.1} parent=23 // pred_check_branch
          %207 = sbr.rel (%p205) target = $region28
        $region27: #{tpu_custom_call.1} parent=23 // pred_region
          %p208 = scmp.lt.s32.totalorder %s25, 1
          %s209 = scalar_select %p208, %s25, 1
          %p210 = scmp.lt.s32.totalorder %s26, 0
          %s211 = scalar_select %p210, %s26, 0
          %s212 = sadd.s32 %s211, %s209
          %s213 = smul.addr %s212, 8
          %s214 = scalar_lea.vmem %s0, %s213
        $region28: #{tpu_custom_call.1} parent=23 // pred_fallthru
          _
        // Predicated region
        $region29: #{tpu_custom_call.1} parent=23 // pred_check
          %p215 = pneg %p80
        $region30: #{tpu_custom_call.1} parent=23 // pred_check_branch
          %217 = sbr.rel (%p215) target = $region32
        $region31: #{tpu_custom_call.1} parent=23 // pred_region
          %p218 = scmp.lt.s32.totalorder %s25, 1
          %s219 = scalar_select %p218, %s25, 1
          %p220 = scmp.lt.s32.totalorder %s26, 0
          %s221 = scalar_select %p220, %s26, 0
          %s222 = sadd.s32 %s221, %s219
          %s223 = scalar_lea.vmem %s1, %s222
        $region32: #{tpu_custom_call.1} parent=23 // pred_fallthru
          _
      $region24: #{tpu_custom_call.1} parent=5 // pred_fallthru
        _
      %p224 = scmp.le.s32.totalorder 1, %s18
      %p225 = scmp.lt.s32.totalorder %s18, 3
      %p226 = pnand %p224, %p225
      %p227 = pneg %p226
      // Predicated region
      $region33: #{tpu_custom_call.1} parent=5 // pred_check
        _
      $region34: #{tpu_custom_call.1} parent=5 // pred_check_branch
        %229 = sbr.rel (%p226) target = $region36
      $region35: #{tpu_custom_call.1} parent=5 // pred_region
        %s230 = ssub.s32 %s18, 1
        %p231 = scmp.lt.s32.totalorder %s27, 1
        %s232 = scalar_select %p231, %s27, 1
        %p233 = scmp.lt.s32.totalorder %s28, 0
        %s234 = scalar_select %p233, %s28, 0
        %s235 = sadd.s32 %s234, %s232
        %s236 = smul.addr %s235, 8
        %s237 = scalar_lea.vmem %s0, %s236
        %p238 = pneg %p58
        %p239 = pneg %p55
        %p240 = scmp.lt.s32.totalorder %s27, 1
        %s241 = scalar_select %p240, %s27, 1
        %p242 = scmp.lt.s32.totalorder %s28, 0
        %s243 = scalar_select %p242, %s28, 0
        %s244 = sadd.s32 %s243, %s241
        %s245 = scalar_lea.vmem %s1, %s244
        %p246 = pneg %p86
        %p247 = pneg %p83
        %p248 = pneg %p107
        %p249 = pneg %p104
        %p250 = pneg %p128
        %p251 = pneg %p125
        %p252 = pneg %p154
        %p253 = pneg %p151
        %s254 = sand.u32 %s141, 1
        %s255 = scalar_lea.sflag [#allocation4], %s254
        %s256 = sand.u32 %s141, 1
        %s257 = scalar_lea.vmem [#allocation3], %s256
        %p258 = pneg %p180
        %p259 = pneg %p177
        %s260 = sand.u32 %s167, 1
        %s261 = scalar_lea.sflag [#allocation6], %s260
        %s262 = sand.u32 %s167, 1
        %s263 = scalar_lea.vmem [#allocation5], %s262
        %p264 = scmp.lt.s32.totalorder %s27, 1
        %s265 = scalar_select %p264, %s27, 1
        %p266 = scmp.lt.s32.totalorder %s28, 0
        %s267 = scalar_select %p266, %s28, 0
        %s268 = sadd.s32 %s267, %s265
        %s269 = smul.addr %s268, 8
        %s270 = scalar_lea.vmem %s0, %s269
        %p271 = scmp.lt.s32.totalorder %s27, 1
        %s272 = scalar_select %p271, %s27, 1
        %p273 = scmp.lt.s32.totalorder %s28, 0
        %s274 = scalar_select %p273, %s28, 0
        %s275 = sadd.s32 %s274, %s272
        %s276 = scalar_lea.vmem %s1, %s275
        %p277 = scmp.eq.s32.totalorder %s28, 0
        // Predicated region
        $region37: #{tpu_custom_call.1} parent=35 // pred_check
          %p278 = pneg %p277
        $region38: #{tpu_custom_call.1} parent=35 // pred_check_branch
          %280 = sbr.rel (%p278) target = $region40
        $region39: #{tpu_custom_call.1} parent=35 // pred_region
          %vm281 = vcmask 253952
          %282 = vst.msk [vmem:[%s257] sm:$0x1] %vm281, 0.0
          %vm283 = vcmask 0
          %284 = vst.msk [vmem:[#allocation2] sm:$0x1] %vm283, 0.0
        $region40: #{tpu_custom_call.1} parent=35 // pred_fallthru
          _
        %v285 = vld [vmem:[%s270] sm:$0xff]
        %v286 = vld [vmem:[%s276] sm:$0x1]
        %v287 = vld [vmem:[%s257] sm:$0x1]
        %vm288 = vcmask 64512
        %v290 = vsel %vm288, %v286, 0
        %292 = vmatprep.subr.mxu0 0.0
        %v293 = vand.u32 %v285, 4294901760
        %294 = vmatpush1.msra.mxu0 %v293
        %295 = vmatprep.subr.mxu0 0.0
        %296 = vmatpush1.msra.mxu0 0.0
        %297 = vmatprep.subr.mxu0 0.0
        %298 = vmatpush1.msra.mxu0 0.0
        %299 = vmatprep.subr.mxu0 0.0
        %300 = vmatpush1.msra.mxu0 0.0
        %301 = vmatprep.subr.mxu0 0.0
        %302 = vmatpush1.msra.mxu0 0.0
        %303 = vmatprep.subr.mxu0 0.0
        %304 = vmatpush1.msra.mxu0 0.0
        %305 = vmatprep.subr.mxu0 0.0
        %306 = vmatpush1.msra.mxu0 0.0
        %307 = vmatprep.subr.mxu0 0.0
        %308 = vmatpush1.msra.mxu0 0.0
        %309 = vmatprep.subr.mxu0 0.0
        %310 = vmatpush1.msra.mxu0 0.0
        %311 = vmatprep.subr.mxu0 0.0
        %312 = vmatpush1.msra.mxu0 0.0
        %313 = vmatprep.subr.mxu0 0.0
        %314 = vmatpush1.msra.mxu0 0.0
        %315 = vmatprep.subr.mxu0 0.0
        %316 = vmatpush1.msra.mxu0 0.0
        %317 = vmatprep.subr.mxu0 0.0
        %318 = vmatpush1.msra.mxu0 0.0
        %319 = vmatprep.subr.mxu0 0.0
        %320 = vmatpush1.msra.mxu0 0.0
        %321 = vmatprep.subr.mxu0 0.0
        %322 = vmatpush1.msra.mxu0 0.0
        %323 = vmatprep.subr.mxu0 0.0
        %324 = vmatpush1.msra.mxu0 0.0
        %325 = vmatprep.subr.mxu0 0.0
        %326 = vmatpush1.msra.mxu0 0.0
        %327 = vmatprep.subr.mxu0 0.0
        %328 = vmatpush1.msra.mxu0 0.0
        %329 = vmatprep.subr.mxu0 0.0
        %330 = vmatpush1.msra.mxu0 0.0
        %331 = vmatprep.subr.mxu0 0.0
        %332 = vmatpush1.msra.mxu0 0.0
        %333 = vmatprep.subr.mxu0 0.0
        %334 = vmatpush1.msra.mxu0 0.0
        %335 = vmatprep.subr.mxu0 0.0
        %336 = vmatpush1.msra.mxu0 0.0
        %337 = vmatprep.subr.mxu0 0.0
        %338 = vmatpush1.msra.mxu0 0.0
        %339 = vmatprep.subr.mxu0 0.0
        %340 = vmatpush1.msra.mxu0 0.0
        %341 = vmatprep.subr.mxu0 0.0
        %342 = vmatpush1.msra.mxu0 0.0
        %343 = vmatprep.subr.mxu0 0.0
        %344 = vmatpush1.msra.mxu0 0.0
        %345 = vmatprep.subr.mxu0 0.0
        %346 = vmatpush1.msra.mxu0 0.0
        %347 = vmatprep.subr.mxu0 0.0
        %348 = vmatpush1.msra.mxu0 0.0
        %349 = vmatprep.subr.mxu0 0.0
        %350 = vmatpush1.msra.mxu0 0.0
        %351 = vmatprep.subr.mxu0 0.0
        %352 = vmatpush1.msra.mxu0 0.0
        %353 = vmatprep.subr.mxu0 0.0
        %354 = vmatpush1.msra.mxu0 0.0
        %355 = vmatprep.subr.mxu0 0.0
        %356 = vmatpush1.msra.mxu0 0.0
        %357 = vmatprep.mubr.f32.mxu0 0.0
        %v358 = vand.u32 %v290, 4294901760
        %v359 = vsub.f32 %v290, %v358
        %v360 = vand.u32 %v359, 4294901760
        %v361 = vsub.f32 %v359, %v360
        %v362 = vand.u32 %v361, 4294901760
        %363 = vmatmul.mubr.f32.gmra.mrb[0].mxu0 %v362
        %v364 = vpop.f32.mrb[0].mxu0
        %v365 = vadd.f32 0.0, %v364
        %v366 = vpop.f32.mrb[0].mxu0
        %367 = vdwg.mxu0
        %368 = vmatprep.subr.mxu0 0.0
        %v369 = vand.u32 %v285, 4294901760
        %v370 = vsub.f32 %v285, %v369
        %v371 = vand.u32 %v370, 4294901760
        %v372 = vsub.f32 %v370, %v371
        %v373 = vand.u32 %v372, 4294901760
        %374 = vmatpush1.msra.mxu0 %v373
        %375 = vmatprep.subr.mxu0 0.0
        %376 = vmatpush1.msra.mxu0 0.0
        %377 = vmatprep.subr.mxu0 0.0
        %378 = vmatpush1.msra.mxu0 0.0
        %379 = vmatprep.subr.mxu0 0.0
        %380 = vmatpush1.msra.mxu0 0.0
        %381 = vmatprep.subr.mxu0 0.0
        %382 = vmatpush1.msra.mxu0 0.0
        %383 = vmatprep.subr.mxu0 0.0
        %384 = vmatpush1.msra.mxu0 0.0
        %385 = vmatprep.subr.mxu0 0.0
        %386 = vmatpush1.msra.mxu0 0.0
        %387 = vmatprep.subr.mxu0 0.0
        %388 = vmatpush1.msra.mxu0 0.0
        %389 = vmatprep.subr.mxu0 0.0
        %390 = vmatpush1.msra.mxu0 0.0
        %391 = vmatprep.subr.mxu0 0.0
        %392 = vmatpush1.msra.mxu0 0.0
        %393 = vmatprep.subr.mxu0 0.0
        %394 = vmatpush1.msra.mxu0 0.0
        %395 = vmatprep.subr.mxu0 0.0
        %396 = vmatpush1.msra.mxu0 0.0
        %397 = vmatprep.subr.mxu0 0.0
        %398 = vmatpush1.msra.mxu0 0.0
        %399 = vmatprep.subr.mxu0 0.0
        %400 = vmatpush1.msra.mxu0 0.0
        %401 = vmatprep.subr.mxu0 0.0
        %402 = vmatpush1.msra.mxu0 0.0
        %403 = vmatprep.subr.mxu0 0.0
        %404 = vmatpush1.msra.mxu0 0.0
        %405 = vmatprep.subr.mxu0 0.0
        %406 = vmatpush1.msra.mxu0 0.0
        %407 = vmatprep.subr.mxu0 0.0
        %408 = vmatpush1.msra.mxu0 0.0
        %409 = vmatprep.subr.mxu0 0.0
        %410 = vmatpush1.msra.mxu0 0.0
        %411 = vmatprep.subr.mxu0 0.0
        %412 = vmatpush1.msra.mxu0 0.0
        %413 = vmatprep.subr.mxu0 0.0
        %414 = vmatpush1.msra.mxu0 0.0
        %415 = vmatprep.subr.mxu0 0.0
        %416 = vmatpush1.msra.mxu0 0.0
        %417 = vmatprep.subr.mxu0 0.0
        %418 = vmatpush1.msra.mxu0 0.0
        %419 = vmatprep.subr.mxu0 0.0
        %420 = vmatpush1.msra.mxu0 0.0
        %421 = vmatprep.subr.mxu0 0.0
        %422 = vmatpush1.msra.mxu0 0.0
        %423 = vmatprep.subr.mxu0 0.0
        %424 = vmatpush1.msra.mxu0 0.0
        %425 = vmatprep.subr.mxu0 0.0
        %426 = vmatpush1.msra.mxu0 0.0
        %427 = vmatprep.subr.mxu0 0.0
        %428 = vmatpush1.msra.mxu0 0.0
        %429 = vmatprep.subr.mxu0 0.0
        %430 = vmatpush1.msra.mxu0 0.0
        %431 = vmatprep.subr.mxu0 0.0
        %432 = vmatpush1.msra.mxu0 0.0
        %433 = vmatprep.subr.mxu0 0.0
        %434 = vmatpush1.msra.mxu0 0.0
        %435 = vmatprep.subr.mxu0 0.0
        %436 = vmatpush1.msra.mxu0 0.0
        %437 = vmatprep.mubr.f32.mxu0 0.0
        %v438 = vand.u32 %v290, 4294901760
        %439 = vmatmul.mubr.f32.gmra.mrb[0].mxu0 %v438
        %v440 = vpop.f32.mrb[0].mxu0
        %v441 = vadd.f32 %v365, %v440
        %v442 = vpop.f32.mrb[0].mxu0
        %443 = vdwg.mxu0
        %444 = vmatprep.subr.mxu0 0.0
        %v445 = vand.u32 %v285, 4294901760
        %v446 = vsub.f32 %v285, %v445
        %447 = vmatpush1.msra.mxu0 %v446
        %448 = vmatprep.subr.mxu0 0.0
        %449 = vmatpush1.msra.mxu0 0.0
        %450 = vmatprep.subr.mxu0 0.0
        %451 = vmatpush1.msra.mxu0 0.0
        %452 = vmatprep.subr.mxu0 0.0
        %453 = vmatpush1.msra.mxu0 0.0
        %454 = vmatprep.subr.mxu0 0.0
        %455 = vmatpush1.msra.mxu0 0.0
        %456 = vmatprep.subr.mxu0 0.0
        %457 = vmatpush1.msra.mxu0 0.0
        %458 = vmatprep.subr.mxu0 0.0
        %459 = vmatpush1.msra.mxu0 0.0
        %460 = vmatprep.subr.mxu0 0.0
        %461 = vmatpush1.msra.mxu0 0.0
        %462 = vmatprep.subr.mxu0 0.0
        %463 = vmatpush1.msra.mxu0 0.0
        %464 = vmatprep.subr.mxu0 0.0
        %465 = vmatpush1.msra.mxu0 0.0
        %466 = vmatprep.subr.mxu0 0.0
        %467 = vmatpush1.msra.mxu0 0.0
        %468 = vmatprep.subr.mxu0 0.0
        %469 = vmatpush1.msra.mxu0 0.0
        %470 = vmatprep.subr.mxu0 0.0
        %471 = vmatpush1.msra.mxu0 0.0
        %472 = vmatprep.subr.mxu0 0.0
        %473 = vmatpush1.msra.mxu0 0.0
        %474 = vmatprep.subr.mxu0 0.0
        %475 = vmatpush1.msra.mxu0 0.0
        %476 = vmatprep.subr.mxu0 0.0
        %477 = vmatpush1.msra.mxu0 0.0
        %478 = vmatprep.subr.mxu0 0.0
        %479 = vmatpush1.msra.mxu0 0.0
        %480 = vmatprep.subr.mxu0 0.0
        %481 = vmatpush1.msra.mxu0 0.0
        %482 = vmatprep.subr.mxu0 0.0
        %483 = vmatpush1.msra.mxu0 0.0
        %484 = vmatprep.subr.mxu0 0.0
        %485 = vmatpush1.msra.mxu0 0.0
        %486 = vmatprep.subr.mxu0 0.0
        %487 = vmatpush1.msra.mxu0 0.0
        %488 = vmatprep.subr.mxu0 0.0
        %489 = vmatpush1.msra.mxu0 0.0
        %490 = vmatprep.subr.mxu0 0.0
        %491 = vmatpush1.msra.mxu0 0.0
        %492 = vmatprep.subr.mxu0 0.0
        %493 = vmatpush1.msra.mxu0 0.0
        %494 = vmatprep.subr.mxu0 0.0
        %495 = vmatpush1.msra.mxu0 0.0
        %496 = vmatprep.subr.mxu0 0.0
        %497 = vmatpush1.msra.mxu0 0.0
        %498 = vmatprep.subr.mxu0 0.0
        %499 = vmatpush1.msra.mxu0 0.0
        %500 = vmatprep.subr.mxu0 0.0
        %501 = vmatpush1.msra.mxu0 0.0
        %502 = vmatprep.subr.mxu0 0.0
        %503 = vmatpush1.msra.mxu0 0.0
        %504 = vmatprep.subr.mxu0 0.0
        %505 = vmatpush1.msra.mxu0 0.0
        %506 = vmatprep.subr.mxu0 0.0
        %507 = vmatpush1.msra.mxu0 0.0
        %508 = vmatprep.subr.mxu0 0.0
        %509 = vmatpush1.msra.mxu0 0.0
        %510 = vmatprep.mubr.f32.mxu0 0.0
        %v511 = vand.u32 %v290, 4294901760
        %v512 = vsub.f32 %v290, %v511
        %513 = vmatmul.mubr.f32.gmra.mrb[0].mxu0 %v512
        %v514 = vpop.f32.mrb[0].mxu0
        %v515 = vadd.f32 %v441, %v514
        %v516 = vpop.f32.mrb[0].mxu0
        %517 = vdwg.mxu0
        %518 = vmatprep.subr.mxu0 0.0
        %v519 = vand.u32 %v285, 4294901760
        %520 = vmatpush1.msra.mxu0 %v519
        %521 = vmatprep.subr.mxu0 0.0
        %522 = vmatpush1.msra.mxu0 0.0
        %523 = vmatprep.subr.mxu0 0.0
        %524 = vmatpush1.msra.mxu0 0.0
        %525 = vmatprep.subr.mxu0 0.0
        %526 = vmatpush1.msra.mxu0 0.0
        %527 = vmatprep.subr.mxu0 0.0
        %528 = vmatpush1.msra.mxu0 0.0
        %529 = vmatprep.subr.mxu0 0.0
        %530 = vmatpush1.msra.mxu0 0.0
        %531 = vmatprep.subr.mxu0 0.0
        %532 = vmatpush1.msra.mxu0 0.0
        %533 = vmatprep.subr.mxu0 0.0
        %534 = vmatpush1.msra.mxu0 0.0
        %535 = vmatprep.subr.mxu0 0.0
        %536 = vmatpush1.msra.mxu0 0.0
        %537 = vmatprep.subr.mxu0 0.0
        %538 = vmatpush1.msra.mxu0 0.0
        %539 = vmatprep.subr.mxu0 0.0
        %540 = vmatpush1.msra.mxu0 0.0
        %541 = vmatprep.subr.mxu0 0.0
        %542 = vmatpush1.msra.mxu0 0.0
        %543 = vmatprep.subr.mxu0 0.0
        %544 = vmatpush1.msra.mxu0 0.0
        %545 = vmatprep.subr.mxu0 0.0
        %546 = vmatpush1.msra.mxu0 0.0
        %547 = vmatprep.subr.mxu0 0.0
        %548 = vmatpush1.msra.mxu0 0.0
        %549 = vmatprep.subr.mxu0 0.0
        %550 = vmatpush1.msra.mxu0 0.0
        %551 = vmatprep.subr.mxu0 0.0
        %552 = vmatpush1.msra.mxu0 0.0
        %553 = vmatprep.subr.mxu0 0.0
        %554 = vmatpush1.msra.mxu0 0.0
        %555 = vmatprep.subr.mxu0 0.0
        %556 = vmatpush1.msra.mxu0 0.0
        %557 = vmatprep.subr.mxu0 0.0
        %558 = vmatpush1.msra.mxu0 0.0
        %559 = vmatprep.subr.mxu0 0.0
        %560 = vmatpush1.msra.mxu0 0.0
        %561 = vmatprep.subr.mxu0 0.0
        %562 = vmatpush1.msra.mxu0 0.0
        %563 = vmatprep.subr.mxu0 0.0
        %564 = vmatpush1.msra.mxu0 0.0
        %565 = vmatprep.subr.mxu0 0.0
        %566 = vmatpush1.msra.mxu0 0.0
        %567 = vmatprep.subr.mxu0 0.0
        %568 = vmatpush1.msra.mxu0 0.0
        %569 = vmatprep.subr.mxu0 0.0
        %570 = vmatpush1.msra.mxu0 0.0
        %571 = vmatprep.subr.mxu0 0.0
        %572 = vmatpush1.msra.mxu0 0.0
        %573 = vmatprep.subr.mxu0 0.0
        %574 = vmatpush1.msra.mxu0 0.0
        %575 = vmatprep.subr.mxu0 0.0
        %576 = vmatpush1.msra.mxu0 0.0
        %577 = vmatprep.subr.mxu0 0.0
        %578 = vmatpush1.msra.mxu0 0.0
        %579 = vmatprep.subr.mxu0 0.0
        %580 = vmatpush1.msra.mxu0 0.0
        %581 = vmatprep.subr.mxu0 0.0
        %582 = vmatpush1.msra.mxu0 0.0
        %583 = vmatprep.mubr.f32.mxu0 0.0
        %v584 = vand.u32 %v290, 4294901760
        %v585 = vsub.f32 %v290, %v584
        %v586 = vand.u32 %v585, 4294901760
        %587 = vmatmul.mubr.f32.gmra.mrb[0].mxu0 %v586
        %v588 = vpop.f32.mrb[0].mxu0
        %v589 = vadd.f32 %v515, %v588
        %v590 = vpop.f32.mrb[0].mxu0
        %591 = vdwg.mxu0
        %592 = vmatprep.subr.mxu0 0.0
        %v593 = vand.u32 %v285, 4294901760
        %v594 = vsub.f32 %v285, %v593
        %v595 = vand.u32 %v594, 4294901760
        %596 = vmatpush1.msra.mxu0 %v595
        %597 = vmatprep.subr.mxu0 0.0
        %598 = vmatpush1.msra.mxu0 0.0
        %599 = vmatprep.subr.mxu0 0.0
        %600 = vmatpush1.msra.mxu0 0.0
        %601 = vmatprep.subr.mxu0 0.0
        %602 = vmatpush1.msra.mxu0 0.0
        %603 = vmatprep.subr.mxu0 0.0
        %604 = vmatpush1.msra.mxu0 0.0
        %605 = vmatprep.subr.mxu0 0.0
        %606 = vmatpush1.msra.mxu0 0.0
        %607 = vmatprep.subr.mxu0 0.0
        %608 = vmatpush1.msra.mxu0 0.0
        %609 = vmatprep.subr.mxu0 0.0
        %610 = vmatpush1.msra.mxu0 0.0
        %611 = vmatprep.subr.mxu0 0.0
        %612 = vmatpush1.msra.mxu0 0.0
        %613 = vmatprep.subr.mxu0 0.0
        %614 = vmatpush1.msra.mxu0 0.0
        %615 = vmatprep.subr.mxu0 0.0
        %616 = vmatpush1.msra.mxu0 0.0
        %617 = vmatprep.subr.mxu0 0.0
        %618 = vmatpush1.msra.mxu0 0.0
        %619 = vmatprep.subr.mxu0 0.0
        %620 = vmatpush1.msra.mxu0 0.0
        %621 = vmatprep.subr.mxu0 0.0
        %622 = vmatpush1.msra.mxu0 0.0
        %623 = vmatprep.subr.mxu0 0.0
        %624 = vmatpush1.msra.mxu0 0.0
        %625 = vmatprep.subr.mxu0 0.0
        %626 = vmatpush1.msra.mxu0 0.0
        %627 = vmatprep.subr.mxu0 0.0
        %628 = vmatpush1.msra.mxu0 0.0
        %629 = vmatprep.subr.mxu0 0.0
        %630 = vmatpush1.msra.mxu0 0.0
        %631 = vmatprep.subr.mxu0 0.0
        %632 = vmatpush1.msra.mxu0 0.0
        %633 = vmatprep.subr.mxu0 0.0
        %634 = vmatpush1.msra.mxu0 0.0
        %635 = vmatprep.subr.mxu0 0.0
        %636 = vmatpush1.msra.mxu0 0.0
        %637 = vmatprep.subr.mxu0 0.0
        %638 = vmatpush1.msra.mxu0 0.0
        %639 = vmatprep.subr.mxu0 0.0
        %640 = vmatpush1.msra.mxu0 0.0
        %641 = vmatprep.subr.mxu0 0.0
        %642 = vmatpush1.msra.mxu0 0.0
        %643 = vmatprep.subr.mxu0 0.0
        %644 = vmatpush1.msra.mxu0 0.0
        %645 = vmatprep.subr.mxu0 0.0
        %646 = vmatpush1.msra.mxu0 0.0
        %647 = vmatprep.subr.mxu0 0.0
        %648 = vmatpush1.msra.mxu0 0.0
        %649 = vmatprep.subr.mxu0 0.0
        %650 = vmatpush1.msra.mxu0 0.0
        %651 = vmatprep.subr.mxu0 0.0
        %652 = vmatpush1.msra.mxu0 0.0
        %653 = vmatprep.subr.mxu0 0.0
        %654 = vmatpush1.msra.mxu0 0.0
        %655 = vmatprep.subr.mxu0 0.0
        %656 = vmatpush1.msra.mxu0 0.0
        %657 = vmatprep.subr.mxu0 0.0
        %658 = vmatpush1.msra.mxu0 0.0
        %659 = vmatprep.mubr.f32.mxu0 0.0
        %v660 = vand.u32 %v290, 4294901760
        %661 = vmatmul.mubr.f32.gmra.mrb[0].mxu0 %v660
        %v662 = vpop.f32.mrb[0].mxu0
        %v663 = vadd.f32 %v589, %v662
        %v664 = vpop.f32.mrb[0].mxu0
        %665 = vdwg.mxu0
        %666 = vmatprep.subr.mxu0 0.0
        %v667 = vand.u32 %v285, 4294901760
        %668 = vmatpush1.msra.mxu0 %v667
        %669 = vmatprep.subr.mxu0 0.0
        %670 = vmatpush1.msra.mxu0 0.0
        %671 = vmatprep.subr.mxu0 0.0
        %672 = vmatpush1.msra.mxu0 0.0
        %673 = vmatprep.subr.mxu0 0.0
        %674 = vmatpush1.msra.mxu0 0.0
        %675 = vmatprep.subr.mxu0 0.0
        %676 = vmatpush1.msra.mxu0 0.0
        %677 = vmatprep.subr.mxu0 0.0
        %678 = vmatpush1.msra.mxu0 0.0
        %679 = vmatprep.subr.mxu0 0.0
        %680 = vmatpush1.msra.mxu0 0.0
        %681 = vmatprep.subr.mxu0 0.0
        %682 = vmatpush1.msra.mxu0 0.0
        %683 = vmatprep.subr.mxu0 0.0
        %684 = vmatpush1.msra.mxu0 0.0
        %685 = vmatprep.subr.mxu0 0.0
        %686 = vmatpush1.msra.mxu0 0.0
        %687 = vmatprep.subr.mxu0 0.0
        %688 = vmatpush1.msra.mxu0 0.0
        %689 = vmatprep.subr.mxu0 0.0
        %690 = vmatpush1.msra.mxu0 0.0
        %691 = vmatprep.subr.mxu0 0.0
        %692 = vmatpush1.msra.mxu0 0.0
        %693 = vmatprep.subr.mxu0 0.0
        %694 = vmatpush1.msra.mxu0 0.0
        %695 = vmatprep.subr.mxu0 0.0
        %696 = vmatpush1.msra.mxu0 0.0
        %697 = vmatprep.subr.mxu0 0.0
        %698 = vmatpush1.msra.mxu0 0.0
        %699 = vmatprep.subr.mxu0 0.0
        %700 = vmatpush1.msra.mxu0 0.0
        %701 = vmatprep.subr.mxu0 0.0
        %702 = vmatpush1.msra.mxu0 0.0
        %703 = vmatprep.subr.mxu0 0.0
        %704 = vmatpush1.msra.mxu0 0.0
        %705 = vmatprep.subr.mxu0 0.0
        %706 = vmatpush1.msra.mxu0 0.0
        %707 = vmatprep.subr.mxu0 0.0
        %708 = vmatpush1.msra.mxu0 0.0
        %709 = vmatprep.subr.mxu0 0.0
        %710 = vmatpush1.msra.mxu0 0.0
        %711 = vmatprep.subr.mxu0 0.0
        %712 = vmatpush1.msra.mxu0 0.0
        %713 = vmatprep.subr.mxu0 0.0
        %714 = vmatpush1.msra.mxu0 0.0
        %715 = vmatprep.subr.mxu0 0.0
        %716 = vmatpush1.msra.mxu0 0.0
        %717 = vmatprep.subr.mxu0 0.0
        %718 = vmatpush1.msra.mxu0 0.0
        %719 = vmatprep.subr.mxu0 0.0
        %720 = vmatpush1.msra.mxu0 0.0
        %721 = vmatprep.subr.mxu0 0.0
        %722 = vmatpush1.msra.mxu0 0.0
        %723 = vmatprep.subr.mxu0 0.0
        %724 = vmatpush1.msra.mxu0 0.0
        %725 = vmatprep.subr.mxu0 0.0
        %726 = vmatpush1.msra.mxu0 0.0
        %727 = vmatprep.subr.mxu0 0.0
        %728 = vmatpush1.msra.mxu0 0.0
        %729 = vmatprep.subr.mxu0 0.0
        %730 = vmatpush1.msra.mxu0 0.0
        %731 = vmatprep.mubr.f32.mxu0 0.0
        %v732 = vand.u32 %v290, 4294901760
        %733 = vmatmul.mubr.f32.gmra.mrb[0].mxu0 %v732
        %v734 = vpop.f32.mrb[0].mxu0
        %v735 = vadd.f32 %v663, %v734
        %v736 = vpop.f32.mrb[0].mxu0
        %737 = vdwg.mxu0
        %v738 = vadd.f32 %v287, %v735
        %vm739 = vcmask 253952
        %740 = vst.msk [vmem:[%s257] sm:$0x1] %vm739, %v738
        %v741 = vld [vmem:[#allocation2] sm:$0x1]
        %vm742 = vcmask 57344
        %v743 = vsel %vm742, %v286, 0.0
        %744 = vadd.xlane.f32.xlu0 %v743
        %v745 = vpop.xlane.xlu0 %744
        %v746 = vadd.f32 %v741, %v745
        %vm747 = vcmask 0
        %748 = vst.msk [vmem:[#allocation2] sm:$0x1] %vm747, %v746
        // Predicated region
        $region41: #{tpu_custom_call.1} parent=35 // pred_check
          %p749 = pneg %p277
        $region42: #{tpu_custom_call.1} parent=35 // pred_check_branch
          %751 = sbr.rel (%p749) target = $region44
        $region43: #{tpu_custom_call.1} parent=35 // pred_region
          %v752 = vld [vmem:[#allocation2] sm:$0x1]
          %v753 = vmax.f32 %v752, 1e-09
          %v754 = vrcp.pop %v753
          %v755 = vld [vmem:[%s257] sm:$0x1]
          %757 = vset.pattern.permute.xlu0 0
          %758 = vperm.xlu0 %757, %v754
          %v759 = vpop.permute.xlu0 %758
          %v761 = vlaneseq
          %v762 = vshrl.u32 %v761, 7
          %v763 = vsub.s32 0, %v762
          %v764 = vrot.slane %v759, %v763
          %v765 = vmul.f32 %v755, %v764
          %766 = vst.msk [vmem:[%s257] sm:$0x1] %vm739, %v765
          %v767 = vld [vmem:[%s2] sm:$0xff]
          %v768 = vld [vmem:[%s2 + $0x8] sm:$0xff]
          %v769 = vld [vmem:[%s2 + $0x10] sm:$0xff]
          %v770 = vld [vmem:[%s2 + $0x18] sm:$0xff]
          %v771 = vld [vmem:[%s3] sm:$0x1]
          %vm772 = vcmask 261120
          %v774 = vsel %vm772, %v765, 0
          %776 = vmatprep.subr.mxu0 0.0
          %v777 = vand.u32 %v767, 4294901760
          %778 = vmatpush1.msra.mxu0 %v777
          %779 = vmatprep.subr.mxu0 0.0
          %v780 = vand.u32 %v768, 4294901760
          %781 = vmatpush1.msra.mxu0 %v780
          %782 = vmatprep.subr.mxu0 0.0
          %v783 = vand.u32 %v769, 4294901760
          %784 = vmatpush1.msra.mxu0 %v783
          %785 = vmatprep.subr.mxu0 0.0
          %v786 = vand.u32 %v770, 4294901760
          %787 = vmatpush1.msra.mxu0 %v786
          %788 = vmatprep.subr.mxu0 0.0
          %789 = vmatpush1.msra.mxu0 0.0
          %790 = vmatprep.subr.mxu0 0.0
          %791 = vmatpush1.msra.mxu0 0.0
          %792 = vmatprep.subr.mxu0 0.0
          %793 = vmatpush1.msra.mxu0 0.0
          %794 = vmatprep.subr.mxu0 0.0
          %795 = vmatpush1.msra.mxu0 0.0
          %796 = vmatprep.subr.mxu0 0.0
          %797 = vmatpush1.msra.mxu0 0.0
          %798 = vmatprep.subr.mxu0 0.0
          %799 = vmatpush1.msra.mxu0 0.0
          %800 = vmatprep.subr.mxu0 0.0
          %801 = vmatpush1.msra.mxu0 0.0
          %802 = vmatprep.subr.mxu0 0.0
          %803 = vmatpush1.msra.mxu0 0.0
          %804 = vmatprep.subr.mxu0 0.0
          %805 = vmatpush1.msra.mxu0 0.0
          %806 = vmatprep.subr.mxu0 0.0
          %807 = vmatpush1.msra.mxu0 0.0
          %808 = vmatprep.subr.mxu0 0.0
          %809 = vmatpush1.msra.mxu0 0.0
          %810 = vmatprep.subr.mxu0 0.0
          %811 = vmatpush1.msra.mxu0 0.0
          %812 = vmatprep.subr.mxu0 0.0
          %813 = vmatpush1.msra.mxu0 0.0
          %814 = vmatprep.subr.mxu0 0.0
          %815 = vmatpush1.msra.mxu0 0.0
          %816 = vmatprep.subr.mxu0 0.0
          %817 = vmatpush1.msra.mxu0 0.0
          %818 = vmatprep.subr.mxu0 0.0
          %819 = vmatpush1.msra.mxu0 0.0
          %820 = vmatprep.subr.mxu0 0.0
          %821 = vmatpush1.msra.mxu0 0.0
          %822 = vmatprep.subr.mxu0 0.0
          %823 = vmatpush1.msra.mxu0 0.0
          %824 = vmatprep.subr.mxu0 0.0
          %825 = vmatpush1.msra.mxu0 0.0
          %826 = vmatprep.subr.mxu0 0.0
          %827 = vmatpush1.msra.mxu0 0.0
          %828 = vmatprep.subr.mxu0 0.0
          %829 = vmatpush1.msra.mxu0 0.0
          %830 = vmatprep.subr.mxu0 0.0
          %831 = vmatpush1.msra.mxu0 0.0
          %832 = vmatprep.subr.mxu0 0.0
          %833 = vmatpush1.msra.mxu0 0.0
          %834 = vmatprep.subr.mxu0 0.0
          %835 = vmatpush1.msra.mxu0 0.0
          %836 = vmatprep.subr.mxu0 0.0
          %837 = vmatpush1.msra.mxu0 0.0
          %838 = vmatprep.subr.mxu0 0.0
          %839 = vmatpush1.msra.mxu0 0.0
          %840 = vmatprep.subr.mxu0 0.0
          %841 = vmatpush1.msra.mxu0 0.0
          %842 = vmatprep.subr.mxu0 0.0
          %843 = vmatpush1.msra.mxu0 0.0
          %844 = vmatprep.mubr.f32.mxu0 0.0
          %v845 = vand.u32 %v774, 4294901760
          %v846 = vsub.f32 %v774, %v845
          %v847 = vand.u32 %v846, 4294901760
          %v848 = vsub.f32 %v846, %v847
          %v849 = vand.u32 %v848, 4294901760
          %850 = vmatmul.mubr.f32.gmra.mrb[0].mxu0 %v849
          %v851 = vpop.f32.mrb[0].mxu0
          %v852 = vadd.f32 %v771, %v851
          %v853 = vpop.f32.mrb[0].mxu0
          %854 = vdwg.mxu0
          %855 = vmatprep.subr.mxu0 0.0
          %v856 = vand.u32 %v767, 4294901760
          %v857 = vsub.f32 %v767, %v856
          %v858 = vand.u32 %v857, 4294901760
          %v859 = vsub.f32 %v857, %v858
          %v860 = vand.u32 %v859, 4294901760
          %861 = vmatpush1.msra.mxu0 %v860
          %862 = vmatprep.subr.mxu0 0.0
          %v863 = vand.u32 %v768, 4294901760
          %v864 = vsub.f32 %v768, %v863
          %v865 = vand.u32 %v864, 4294901760
          %v866 = vsub.f32 %v864, %v865
          %v867 = vand.u32 %v866, 4294901760
          %868 = vmatpush1.msra.mxu0 %v867
          %869 = vmatprep.subr.mxu0 0.0
          %v870 = vand.u32 %v769, 4294901760
          %v871 = vsub.f32 %v769, %v870
          %v872 = vand.u32 %v871, 4294901760
          %v873 = vsub.f32 %v871, %v872
          %v874 = vand.u32 %v873, 4294901760
          %875 = vmatpush1.msra.mxu0 %v874
          %876 = vmatprep.subr.mxu0 0.0
          %v877 = vand.u32 %v770, 4294901760
          %v878 = vsub.f32 %v770, %v877
          %v879 = vand.u32 %v878, 4294901760
          %v880 = vsub.f32 %v878, %v879
          %v881 = vand.u32 %v880, 4294901760
          %882 = vmatpush1.msra.mxu0 %v881
          %883 = vmatprep.subr.mxu0 0.0
          %884 = vmatpush1.msra.mxu0 0.0
          %885 = vmatprep.subr.mxu0 0.0
          %886 = vmatpush1.msra.mxu0 0.0
          %887 = vmatprep.subr.mxu0 0.0
          %888 = vmatpush1.msra.mxu0 0.0
          %889 = vmatprep.subr.mxu0 0.0
          %890 = vmatpush1.msra.mxu0 0.0
          %891 = vmatprep.subr.mxu0 0.0
          %892 = vmatpush1.msra.mxu0 0.0
          %893 = vmatprep.subr.mxu0 0.0
          %894 = vmatpush1.msra.mxu0 0.0
          %895 = vmatprep.subr.mxu0 0.0
          %896 = vmatpush1.msra.mxu0 0.0
          %897 = vmatprep.subr.mxu0 0.0
          %898 = vmatpush1.msra.mxu0 0.0
          %899 = vmatprep.subr.mxu0 0.0
          %900 = vmatpush1.msra.mxu0 0.0
          %901 = vmatprep.subr.mxu0 0.0
          %902 = vmatpush1.msra.mxu0 0.0
          %903 = vmatprep.subr.mxu0 0.0
          %904 = vmatpush1.msra.mxu0 0.0
          %905 = vmatprep.subr.mxu0 0.0
          %906 = vmatpush1.msra.mxu0 0.0
          %907 = vmatprep.subr.mxu0 0.0
          %908 = vmatpush1.msra.mxu0 0.0
          %909 = vmatprep.subr.mxu0 0.0
          %910 = vmatpush1.msra.mxu0 0.0
          %911 = vmatprep.subr.mxu0 0.0
          %912 = vmatpush1.msra.mxu0 0.0
          %913 = vmatprep.subr.mxu0 0.0
          %914 = vmatpush1.msra.mxu0 0.0
          %915 = vmatprep.subr.mxu0 0.0
          %916 = vmatpush1.msra.mxu0 0.0
          %917 = vmatprep.subr.mxu0 0.0
          %918 = vmatpush1.msra.mxu0 0.0
          %919 = vmatprep.subr.mxu0 0.0
          %920 = vmatpush1.msra.mxu0 0.0
          %921 = vmatprep.subr.mxu0 0.0
          %922 = vmatpush1.msra.mxu0 0.0
          %923 = vmatprep.subr.mxu0 0.0
          %924 = vmatpush1.msra.mxu0 0.0
          %925 = vmatprep.subr.mxu0 0.0
          %926 = vmatpush1.msra.mxu0 0.0
          %927 = vmatprep.subr.mxu0 0.0
          %928 = vmatpush1.msra.mxu0 0.0
          %929 = vmatprep.subr.mxu0 0.0
          %930 = vmatpush1.msra.mxu0 0.0
          %931 = vmatprep.subr.mxu0 0.0
          %932 = vmatpush1.msra.mxu0 0.0
          %933 = vmatprep.subr.mxu0 0.0
          %934 = vmatpush1.msra.mxu0 0.0
          %935 = vmatprep.subr.mxu0 0.0
          %936 = vmatpush1.msra.mxu0 0.0
          %937 = vmatprep.subr.mxu0 0.0
          %938 = vmatpush1.msra.mxu0 0.0
          %939 = vmatprep.mubr.f32.mxu0 0.0
          %v940 = vand.u32 %v774, 4294901760
          %941 = vmatmul.mubr.f32.gmra.mrb[0].mxu0 %v940
          %v942 = vpop.f32.mrb[0].mxu0
          %v943 = vadd.f32 %v852, %v942
          %v944 = vpop.f32.mrb[0].mxu0
          %945 = vdwg.mxu0
          %946 = vmatprep.subr.mxu0 0.0
          %v947 = vand.u32 %v767, 4294901760
          %v948 = vsub.f32 %v767, %v947
          %949 = vmatpush1.msra.mxu0 %v948
          %950 = vmatprep.subr.mxu0 0.0
          %v951 = vand.u32 %v768, 4294901760
          %v952 = vsub.f32 %v768, %v951
          %953 = vmatpush1.msra.mxu0 %v952
          %954 = vmatprep.subr.mxu0 0.0
          %v955 = vand.u32 %v769, 4294901760
          %v956 = vsub.f32 %v769, %v955
          %957 = vmatpush1.msra.mxu0 %v956
          %958 = vmatprep.subr.mxu0 0.0
          %v959 = vand.u32 %v770, 4294901760
          %v960 = vsub.f32 %v770, %v959
          %961 = vmatpush1.msra.mxu0 %v960
          %962 = vmatprep.subr.mxu0 0.0
          %963 = vmatpush1.msra.mxu0 0.0
          %964 = vmatprep.subr.mxu0 0.0
          %965 = vmatpush1.msra.mxu0 0.0
          %966 = vmatprep.subr.mxu0 0.0
          %967 = vmatpush1.msra.mxu0 0.0
          %968 = vmatprep.subr.mxu0 0.0
          %969 = vmatpush1.msra.mxu0 0.0
          %970 = vmatprep.subr.mxu0 0.0
          %971 = vmatpush1.msra.mxu0 0.0
          %972 = vmatprep.subr.mxu0 0.0
          %973 = vmatpush1.msra.mxu0 0.0
          %974 = vmatprep.subr.mxu0 0.0
          %975 = vmatpush1.msra.mxu0 0.0
          %976 = vmatprep.subr.mxu0 0.0
          %977 = vmatpush1.msra.mxu0 0.0
          %978 = vmatprep.subr.mxu0 0.0
          %979 = vmatpush1.msra.mxu0 0.0
          %980 = vmatprep.subr.mxu0 0.0
          %981 = vmatpush1.msra.mxu0 0.0
          %982 = vmatprep.subr.mxu0 0.0
          %983 = vmatpush1.msra.mxu0 0.0
          %984 = vmatprep.subr.mxu0 0.0
          %985 = vmatpush1.msra.mxu0 0.0
          %986 = vmatprep.subr.mxu0 0.0
          %987 = vmatpush1.msra.mxu0 0.0
          %988 = vmatprep.subr.mxu0 0.0
          %989 = vmatpush1.msra.mxu0 0.0
          %990 = vmatprep.subr.mxu0 0.0
          %991 = vmatpush1.msra.mxu0 0.0
          %992 = vmatprep.subr.mxu0 0.0
          %993 = vmatpush1.msra.mxu0 0.0
          %994 = vmatprep.subr.mxu0 0.0
          %995 = vmatpush1.msra.mxu0 0.0
          %996 = vmatprep.subr.mxu0 0.0
          %997 = vmatpush1.msra.mxu0 0.0
          %998 = vmatprep.subr.mxu0 0.0
          %999 = vmatpush1.msra.mxu0 0.0
          %1000 = vmatprep.subr.mxu0 0.0
          %1001 = vmatpush1.msra.mxu0 0.0
          %1002 = vmatprep.subr.mxu0 0.0
          %1003 = vmatpush1.msra.mxu0 0.0
          %1004 = vmatprep.subr.mxu0 0.0
          %1005 = vmatpush1.msra.mxu0 0.0
          %1006 = vmatprep.subr.mxu0 0.0
          %1007 = vmatpush1.msra.mxu0 0.0
          %1008 = vmatprep.subr.mxu0 0.0
          %1009 = vmatpush1.msra.mxu0 0.0
          %1010 = vmatprep.subr.mxu0 0.0
          %1011 = vmatpush1.msra.mxu0 0.0
          %1012 = vmatprep.subr.mxu0 0.0
          %1013 = vmatpush1.msra.mxu0 0.0
          %1014 = vmatprep.subr.mxu0 0.0
          %1015 = vmatpush1.msra.mxu0 0.0
          %1016 = vmatprep.subr.mxu0 0.0
          %1017 = vmatpush1.msra.mxu0 0.0
          %1018 = vmatprep.mubr.f32.mxu0 0.0
          %v1019 = vand.u32 %v774, 4294901760
          %v1020 = vsub.f32 %v774, %v1019
          %1021 = vmatmul.mubr.f32.gmra.mrb[0].mxu0 %v1020
          %v1022 = vpop.f32.mrb[0].mxu0
          %v1023 = vadd.f32 %v943, %v1022
          %v1024 = vpop.f32.mrb[0].mxu0
          %1025 = vdwg.mxu0
          %1026 = vmatprep.subr.mxu0 0.0
          %v1027 = vand.u32 %v767, 4294901760
          %1028 = vmatpush1.msra.mxu0 %v1027
          %1029 = vmatprep.subr.mxu0 0.0
          %v1030 = vand.u32 %v768, 4294901760
          %1031 = vmatpush1.msra.mxu0 %v1030
          %1032 = vmatprep.subr.mxu0 0.0
          %v1033 = vand.u32 %v769, 4294901760
          %1034 = vmatpush1.msra.mxu0 %v1033
          %1035 = vmatprep.subr.mxu0 0.0
          %v1036 = vand.u32 %v770, 4294901760
          %1037 = vmatpush1.msra.mxu0 %v1036
          %1038 = vmatprep.subr.mxu0 0.0
          %1039 = vmatpush1.msra.mxu0 0.0
          %1040 = vmatprep.subr.mxu0 0.0
          %1041 = vmatpush1.msra.mxu0 0.0
          %1042 = vmatprep.subr.mxu0 0.0
          %1043 = vmatpush1.msra.mxu0 0.0
          %1044 = vmatprep.subr.mxu0 0.0
          %1045 = vmatpush1.msra.mxu0 0.0
          %1046 = vmatprep.subr.mxu0 0.0
          %1047 = vmatpush1.msra.mxu0 0.0
          %1048 = vmatprep.subr.mxu0 0.0
          %1049 = vmatpush1.msra.mxu0 0.0
          %1050 = vmatprep.subr.mxu0 0.0
          %1051 = vmatpush1.msra.mxu0 0.0
          %1052 = vmatprep.subr.mxu0 0.0
          %1053 = vmatpush1.msra.mxu0 0.0
          %1054 = vmatprep.subr.mxu0 0.0
          %1055 = vmatpush1.msra.mxu0 0.0
          %1056 = vmatprep.subr.mxu0 0.0
          %1057 = vmatpush1.msra.mxu0 0.0
          %1058 = vmatprep.subr.mxu0 0.0
          %1059 = vmatpush1.msra.mxu0 0.0
          %1060 = vmatprep.subr.mxu0 0.0
          %1061 = vmatpush1.msra.mxu0 0.0
          %1062 = vmatprep.subr.mxu0 0.0
          %1063 = vmatpush1.msra.mxu0 0.0
          %1064 = vmatprep.subr.mxu0 0.0
          %1065 = vmatpush1.msra.mxu0 0.0
          %1066 = vmatprep.subr.mxu0 0.0
          %1067 = vmatpush1.msra.mxu0 0.0
          %1068 = vmatprep.subr.mxu0 0.0
          %1069 = vmatpush1.msra.mxu0 0.0
          %1070 = vmatprep.subr.mxu0 0.0
          %1071 = vmatpush1.msra.mxu0 0.0
          %1072 = vmatprep.subr.mxu0 0.0
          %1073 = vmatpush1.msra.mxu0 0.0
          %1074 = vmatprep.subr.mxu0 0.0
          %1075 = vmatpush1.msra.mxu0 0.0
          %1076 = vmatprep.subr.mxu0 0.0
          %1077 = vmatpush1.msra.mxu0 0.0
          %1078 = vmatprep.subr.mxu0 0.0
          %1079 = vmatpush1.msra.mxu0 0.0
          %1080 = vmatprep.subr.mxu0 0.0
          %1081 = vmatpush1.msra.mxu0 0.0
          %1082 = vmatprep.subr.mxu0 0.0
          %1083 = vmatpush1.msra.mxu0 0.0
          %1084 = vmatprep.subr.mxu0 0.0
          %1085 = vmatpush1.msra.mxu0 0.0
          %1086 = vmatprep.subr.mxu0 0.0
          %1087 = vmatpush1.msra.mxu0 0.0
          %1088 = vmatprep.subr.mxu0 0.0
          %1089 = vmatpush1.msra.mxu0 0.0
          %1090 = vmatprep.subr.mxu0 0.0
          %1091 = vmatpush1.msra.mxu0 0.0
          %1092 = vmatprep.subr.mxu0 0.0
          %1093 = vmatpush1.msra.mxu0 0.0
          %1094 = vmatprep.mubr.f32.mxu0 0.0
          %v1095 = vand.u32 %v774, 4294901760
          %v1096 = vsub.f32 %v774, %v1095
          %v1097 = vand.u32 %v1096, 4294901760
          %1098 = vmatmul.mubr.f32.gmra.mrb[0].mxu0 %v1097
          %v1099 = vpop.f32.mrb[0].mxu0
          %v1100 = vadd.f32 %v1023, %v1099
          %v1101 = vpop.f32.mrb[0].mxu0
          %1102 = vdwg.mxu0
          %1103 = vmatprep.subr.mxu0 0.0
          %v1104 = vand.u32 %v767, 4294901760
          %v1105 = vsub.f32 %v767, %v1104
          %v1106 = vand.u32 %v1105, 4294901760
          %1107 = vmatpush1.msra.mxu0 %v1106
          %1108 = vmatprep.subr.mxu0 0.0
          %v1109 = vand.u32 %v768, 4294901760
          %v1110 = vsub.f32 %v768, %v1109
          %v1111 = vand.u32 %v1110, 4294901760
          %1112 = vmatpush1.msra.mxu0 %v1111
          %1113 = vmatprep.subr.mxu0 0.0
          %v1114 = vand.u32 %v769, 4294901760
          %v1115 = vsub.f32 %v769, %v1114
          %v1116 = vand.u32 %v1115, 4294901760
          %1117 = vmatpush1.msra.mxu0 %v1116
          %1118 = vmatprep.subr.mxu0 0.0
          %v1119 = vand.u32 %v770, 4294901760
          %v1120 = vsub.f32 %v770, %v1119
          %v1121 = vand.u32 %v1120, 4294901760
          %1122 = vmatpush1.msra.mxu0 %v1121
          %1123 = vmatprep.subr.mxu0 0.0
          %1124 = vmatpush1.msra.mxu0 0.0
          %1125 = vmatprep.subr.mxu0 0.0
          %1126 = vmatpush1.msra.mxu0 0.0
          %1127 = vmatprep.subr.mxu0 0.0
          %1128 = vmatpush1.msra.mxu0 0.0
          %1129 = vmatprep.subr.mxu0 0.0
          %1130 = vmatpush1.msra.mxu0 0.0
          %1131 = vmatprep.subr.mxu0 0.0
          %1132 = vmatpush1.msra.mxu0 0.0
          %1133 = vmatprep.subr.mxu0 0.0
          %1134 = vmatpush1.msra.mxu0 0.0
          %1135 = vmatprep.subr.mxu0 0.0
          %1136 = vmatpush1.msra.mxu0 0.0
          %1137 = vmatprep.subr.mxu0 0.0
          %1138 = vmatpush1.msra.mxu0 0.0
          %1139 = vmatprep.subr.mxu0 0.0
          %1140 = vmatpush1.msra.mxu0 0.0
          %1141 = vmatprep.subr.mxu0 0.0
          %1142 = vmatpush1.msra.mxu0 0.0
          %1143 = vmatprep.subr.mxu0 0.0
          %1144 = vmatpush1.msra.mxu0 0.0
          %1145 = vmatprep.subr.mxu0 0.0
          %1146 = vmatpush1.msra.mxu0 0.0
          %1147 = vmatprep.subr.mxu0 0.0
          %1148 = vmatpush1.msra.mxu0 0.0
          %1149 = vmatprep.subr.mxu0 0.0
          %1150 = vmatpush1.msra.mxu0 0.0
          %1151 = vmatprep.subr.mxu0 0.0
          %1152 = vmatpush1.msra.mxu0 0.0
          %1153 = vmatprep.subr.mxu0 0.0
          %1154 = vmatpush1.msra.mxu0 0.0
          %1155 = vmatprep.subr.mxu0 0.0
          %1156 = vmatpush1.msra.mxu0 0.0
          %1157 = vmatprep.subr.mxu0 0.0
          %1158 = vmatpush1.msra.mxu0 0.0
          %1159 = vmatprep.subr.mxu0 0.0
          %1160 = vmatpush1.msra.mxu0 0.0
          %1161 = vmatprep.subr.mxu0 0.0
          %1162 = vmatpush1.msra.mxu0 0.0
          %1163 = vmatprep.subr.mxu0 0.0
          %1164 = vmatpush1.msra.mxu0 0.0
          %1165 = vmatprep.subr.mxu0 0.0
          %1166 = vmatpush1.msra.mxu0 0.0
          %1167 = vmatprep.subr.mxu0 0.0
          %1168 = vmatpush1.msra.mxu0 0.0
          %1169 = vmatprep.subr.mxu0 0.0
          %1170 = vmatpush1.msra.mxu0 0.0
          %1171 = vmatprep.subr.mxu0 0.0
          %1172 = vmatpush1.msra.mxu0 0.0
          %1173 = vmatprep.subr.mxu0 0.0
          %1174 = vmatpush1.msra.mxu0 0.0
          %1175 = vmatprep.subr.mxu0 0.0
          %1176 = vmatpush1.msra.mxu0 0.0
          %1177 = vmatprep.subr.mxu0 0.0
          %1178 = vmatpush1.msra.mxu0 0.0
          %1179 = vmatprep.mubr.f32.mxu0 0.0
          %v1180 = vand.u32 %v774, 4294901760
          %1181 = vmatmul.mubr.f32.gmra.mrb[0].mxu0 %v1180
          %v1182 = vpop.f32.mrb[0].mxu0
          %v1183 = vadd.f32 %v1100, %v1182
          %v1184 = vpop.f32.mrb[0].mxu0
          %1185 = vdwg.mxu0
          %1186 = vmatprep.subr.mxu0 0.0
          %v1187 = vand.u32 %v767, 4294901760
          %1188 = vmatpush1.msra.mxu0 %v1187
          %1189 = vmatprep.subr.mxu0 0.0
          %v1190 = vand.u32 %v768, 4294901760
          %1191 = vmatpush1.msra.mxu0 %v1190
          %1192 = vmatprep.subr.mxu0 0.0
          %v1193 = vand.u32 %v769, 4294901760
          %1194 = vmatpush1.msra.mxu0 %v1193
          %1195 = vmatprep.subr.mxu0 0.0
          %v1196 = vand.u32 %v770, 4294901760
          %1197 = vmatpush1.msra.mxu0 %v1196
          %1198 = vmatprep.subr.mxu0 0.0
          %1199 = vmatpush1.msra.mxu0 0.0
          %1200 = vmatprep.subr.mxu0 0.0
          %1201 = vmatpush1.msra.mxu0 0.0
          %1202 = vmatprep.subr.mxu0 0.0
          %1203 = vmatpush1.msra.mxu0 0.0
          %1204 = vmatprep.subr.mxu0 0.0
          %1205 = vmatpush1.msra.mxu0 0.0
          %1206 = vmatprep.subr.mxu0 0.0
          %1207 = vmatpush1.msra.mxu0 0.0
          %1208 = vmatprep.subr.mxu0 0.0
          %1209 = vmatpush1.msra.mxu0 0.0
          %1210 = vmatprep.subr.mxu0 0.0
          %1211 = vmatpush1.msra.mxu0 0.0
          %1212 = vmatprep.subr.mxu0 0.0
          %1213 = vmatpush1.msra.mxu0 0.0
          %1214 = vmatprep.subr.mxu0 0.0
          %1215 = vmatpush1.msra.mxu0 0.0
          %1216 = vmatprep.subr.mxu0 0.0
          %1217 = vmatpush1.msra.mxu0 0.0
          %1218 = vmatprep.subr.mxu0 0.0
          %1219 = vmatpush1.msra.mxu0 0.0
          %1220 = vmatprep.subr.mxu0 0.0
          %1221 = vmatpush1.msra.mxu0 0.0
          %1222 = vmatprep.subr.mxu0 0.0
          %1223 = vmatpush1.msra.mxu0 0.0
          %1224 = vmatprep.subr.mxu0 0.0
          %1225 = vmatpush1.msra.mxu0 0.0
          %1226 = vmatprep.subr.mxu0 0.0
          %1227 = vmatpush1.msra.mxu0 0.0
          %1228 = vmatprep.subr.mxu0 0.0
          %1229 = vmatpush1.msra.mxu0 0.0
          %1230 = vmatprep.subr.mxu0 0.0
          %1231 = vmatpush1.msra.mxu0 0.0
          %1232 = vmatprep.subr.mxu0 0.0
          %1233 = vmatpush1.msra.mxu0 0.0
          %1234 = vmatprep.subr.mxu0 0.0
          %1235 = vmatpush1.msra.mxu0 0.0
          %1236 = vmatprep.subr.mxu0 0.0
          %1237 = vmatpush1.msra.mxu0 0.0
          %1238 = vmatprep.subr.mxu0 0.0
          %1239 = vmatpush1.msra.mxu0 0.0
          %1240 = vmatprep.subr.mxu0 0.0
          %1241 = vmatpush1.msra.mxu0 0.0
          %1242 = vmatprep.subr.mxu0 0.0
          %1243 = vmatpush1.msra.mxu0 0.0
          %1244 = vmatprep.subr.mxu0 0.0
          %1245 = vmatpush1.msra.mxu0 0.0
          %1246 = vmatprep.subr.mxu0 0.0
          %1247 = vmatpush1.msra.mxu0 0.0
          %1248 = vmatprep.subr.mxu0 0.0
          %1249 = vmatpush1.msra.mxu0 0.0
          %1250 = vmatprep.subr.mxu0 0.0
          %1251 = vmatpush1.msra.mxu0 0.0
          %1252 = vmatprep.subr.mxu0 0.0
          %1253 = vmatpush1.msra.mxu0 0.0
          %1254 = vmatprep.mubr.f32.mxu0 0.0
          %v1255 = vand.u32 %v774, 4294901760
          %1256 = vmatmul.mubr.f32.gmra.mrb[0].mxu0 %v1255
          %v1257 = vpop.f32.mrb[0].mxu0
          %v1258 = vadd.f32 %v1183, %v1257
          %v1259 = vpop.f32.mrb[0].mxu0
          %1260 = vdwg.mxu0
          %vm1261 = vcmask 16384
          %1262 = vst.msk [vmem:[%s263] sm:$0x1] %vm1261, %v1258
        $region44: #{tpu_custom_call.1} parent=35 // pred_fallthru
          _
        %s1263 = sand.u32 %s141, 1
        %s1264 = scalar_lea.sflag [#allocation4], %s1263
        %s1265 = sand.u32 %s141, 1
        %s1266 = scalar_lea.vmem [#allocation3], %s1265
        %s1267 = sand.u32 %s167, 1
        %s1268 = scalar_lea.sflag [#allocation6], %s1267
        %s1269 = sand.u32 %s167, 1
        %s1270 = scalar_lea.vmem [#allocation5], %s1269
        // Predicated region
        $region45: #{tpu_custom_call.1} parent=35 // pred_check
          %p1271 = pneg %p151
        $region46: #{tpu_custom_call.1} parent=35 // pred_check_branch
          %1273 = sbr.rel (%p1271) target = $region48
        $region47: #{tpu_custom_call.1} parent=35 // pred_region
          %s1275 = ssub.s32 16, 16
          %1276 = vsyncadd %s1264, %s1275
          %s1277 = smul.addr %s27, 16
          %s1278 = scalar_lea.hbm %s4, %s1277
          %s1280 = sshll.u32 %s1266, 4
          %s1281 = int_to_ptr.vmem [resolvable:$true] %s1280
          %1283 = dma.vmem_to_hbm [thread:$0]  %s1281, 16, %s1278, %s1264
        $region48: #{tpu_custom_call.1} parent=35 // pred_fallthru
          _
        // Predicated region
        $region49: #{tpu_custom_call.1} parent=35 // pred_check
          %p1284 = pneg %p177
        $region50: #{tpu_custom_call.1} parent=35 // pred_check_branch
          %1286 = sbr.rel (%p1284) target = $region52
        $region51: #{tpu_custom_call.1} parent=35 // pred_region
          %s1288 = ssub.s32 16, 16
          %1289 = vsyncadd %s1268, %s1288
          %s1290 = smul.addr %s27, 16
          %s1291 = scalar_lea.hbm %s5, %s1290
          %s1293 = sshll.u32 %s1270, 4
          %s1294 = int_to_ptr.vmem [resolvable:$true] %s1293
          %1296 = dma.vmem_to_hbm [thread:$0]  %s1294, 16, %s1291, %s1268
        $region52: #{tpu_custom_call.1} parent=35 // pred_fallthru
          _
      $region36: #{tpu_custom_call.1} parent=5 // pred_fallthru
        _
      %p1297 = scmp.le.s32.totalorder 2, %s18
      // Predicated region
      $region53: #{tpu_custom_call.1} parent=5 // pred_check
        %p1298 = pneg %p1297
      $region54: #{tpu_custom_call.1} parent=5 // pred_check_branch
        %1300 = sbr.rel (%p1298) target = $region56
      $region55: #{tpu_custom_call.1} parent=5 // pred_region
        %s1301 = ssub.s32 %s18, 2
        // Predicated region
        $region57: #{tpu_custom_call.1} parent=55 // pred_check
          %p1302 = pneg %p157
        $region58: #{tpu_custom_call.1} parent=55 // pred_check_branch
          %1304 = sbr.rel (%p1302) target = $region60
        $region59: #{tpu_custom_call.1} parent=55 // pred_region
          %s1305 = sand.u32 %s142, 1
          %s1306 = scalar_lea.sflag [#allocation4], %s1305
          %s1307 = sand.u32 %s142, 1
          %s1308 = scalar_lea.vmem [#allocation3], %s1307
          %1309 = dma.done %s1306, 16
        $region60: #{tpu_custom_call.1} parent=55 // pred_fallthru
          _
        // Predicated region
        $region61: #{tpu_custom_call.1} parent=55 // pred_check
          %p1310 = pneg %p183
        $region62: #{tpu_custom_call.1} parent=55 // pred_check_branch
          %1312 = sbr.rel (%p1310) target = $region64
        $region63: #{tpu_custom_call.1} parent=55 // pred_region
          %s1313 = sand.u32 %s168, 1
          %s1314 = scalar_lea.sflag [#allocation6], %s1313
          %s1315 = sand.u32 %s168, 1
          %s1316 = scalar_lea.vmem [#allocation5], %s1315
          %1317 = dma.done %s1314, 16
        $region64: #{tpu_custom_call.1} parent=55 // pred_fallthru
          _
      $region56: #{tpu_custom_call.1} parent=5 // pred_fallthru
        _
    $region6: #{tpu_custom_call.1} parent=1 // loop_footer
      %s22 = sadd.s32 1, %s18
    $region7: #{tpu_custom_call.1} parent=1 // loop_footer_branch
      %17 = sbr.rel target = $region3
    $region8: #{tpu_custom_call.1} parent=1 // loop_exit
      _
    %1318 = vsyncpa [#allocation4], 1
    %s1319 = scalar_lea.sflag [#allocation4], 1
    %1320 = vsyncpa %s1319, 1
    %1321 = vsyncpa [#allocation6], 1
    %s1322 = scalar_lea.sflag [#allocation6], 1
    %1323 = vsyncpa %s1322, 1

</llo_original>
